<compile_context>
chip_gen: v7x
topology: tpu7x:2x2x1
jax: 0.10.0
libtpu: 0.0.40
codegen_flags: <defaults>
</compile_context>

<pallas_src>
import functools

import jax
import jax.numpy as jnp
from jax.experimental import pallas as pl
from jax.experimental.pallas import tpu as pltpu

# Logical (PyTorch) feature sizes and their 128-lane-padded counterparts.
D_IN, D_H1, D_H2, D_OUT = 100, 200, 400, 784
P_IN, P_H1, P_H2, P_OUT = 128, 256, 512, 896  # all multiples of 128


def _round_up(x, m):
    return (x + m - 1) // m * m


def _choose_batch_tiling(B, tile_max):
    """Pick (tile_b, b_pad, grid_steps):
       * tile_b is a multiple of 8 and <= tile_max (rounded to a multiple of 8),
       * padding waste (b_pad - B) is bounded by ~8*grid_steps rows,
       * grid has >= 2 steps whenever B > 8 (v7x megacore utilization)."""
    tile_max = _round_up(max(int(tile_max), 8), 8)
    b8 = _round_up(B, 8)
    min_steps = 2 if b8 >= 16 else 1          # both TCs busy on v7x when possible
    steps = max(min_steps, pl.cdiv(b8, tile_max))
    tile_b = _round_up(pl.cdiv(b8, steps), 8)  # <= tile_max, multiple of 8
    b_pad = steps * tile_b
    return tile_b, b_pad, steps


def gen_kernel(x_ref, w1_ref, b1_ref, w2_ref, b2_ref, w3_ref, b3_ref, o_ref):
    # fc1 (bf16 operands on the MXU, f32 accumulate); bias+ReLU in bf16.
    h1 = jnp.dot(x_ref[...], w1_ref[...], preferred_element_type=jnp.float32)
    h1 = jnp.maximum(h1.astype(jnp.bfloat16) + b1_ref[...], 0)
    # fc2; bias+ReLU in bf16.
    h2 = jnp.dot(h1, w2_ref[...], preferred_element_type=jnp.float32)
    h2 = jnp.maximum(h2.astype(jnp.bfloat16) + b2_ref[...], 0)
    # fc3 + sigmoid (f32), stored in the output dtype (bf16 by default).
    z = jnp.dot(h2, w3_ref[...], preferred_element_type=jnp.float32)
    o_ref[...] = jax.nn.sigmoid(z + b3_ref[...]).astype(o_ref.dtype)


def gen_forward(x, params, *, tile_b=1024, out_dtype=jnp.bfloat16):
    """x: (B, 100) float32 latent codes -> (B, 784) `out_dtype` images."""
    w1, b1, w2, b2, w3, b3 = params
    B = x.shape[0]

    tb, b_pad, steps = _choose_batch_tiling(B, tile_b)

    # Zero-pad batch + feature dims and cast activations to bf16 for the MXU.
    x_p = jnp.zeros((b_pad, P_IN), jnp.bfloat16)
    x_p = x_p.at[:B, :D_IN].set(x.astype(jnp.bfloat16))

    grid = (steps,)
    const = lambda i: (0, 0)  # weights/biases: same block every step -> VMEM-resident

    out_bytes = b_pad * P_OUT * jnp.dtype(out_dtype).itemsize
    flops = 2 * b_pad * (P_IN * P_H1 + P_H1 * P_H2 + P_H2 * P_OUT)
    bytes_accessed = (x_p.size * 2
                      + (w1.size + w2.size + w3.size) * 2
                      + (b1.size + b2.size) * 2 + b3.size * 4
                      + out_bytes)

    out = pl.pallas_call(
        gen_kernel,
        out_shape=jax.ShapeDtypeStruct((b_pad, P_OUT), out_dtype),
        grid=grid,
        in_specs=[
            pl.BlockSpec((tb, P_IN), lambda i: (i, 0)),  # x tile (streamed)
            pl.BlockSpec((P_IN, P_H1), const),           # w1 (resident, bf16)
            pl.BlockSpec((1, P_H1), const),              # b1 (bf16)
            pl.BlockSpec((P_H1, P_H2), const),           # w2
            pl.BlockSpec((1, P_H2), const),              # b2 (bf16)
            pl.BlockSpec((P_H2, P_OUT), const),          # w3
            pl.BlockSpec((1, P_OUT), const),             # b3 (f32)
        ],
        out_specs=pl.BlockSpec((tb, P_OUT), lambda i: (i, 0)),
        compiler_params=pltpu.CompilerParams(
            dimension_semantics=("parallel",)),
        cost_estimate=pl.CostEstimate(
            flops=flops,
            transcendentals=b_pad * P_OUT,
            bytes_accessed=bytes_accessed),
    )(x_p, w1, b1, w2, b2, w3, b3)

    # Drop batch + lane padding.
    return out[:B, :D_OUT]


def init_params(key):
    """PyTorch nn.Linear-style init (uniform +/- 1/sqrt(fan_in)), zero-padded
    to lane-aligned shapes; weights + hidden biases bf16, final bias f32."""
    dims = [(D_IN, D_H1, P_IN, P_H1, jnp.bfloat16),
            (D_H1, D_H2, P_H1, P_H2, jnp.bfloat16),
            (D_H2, D_OUT, P_H2, P_OUT, jnp.float32)]
    params = []
    for i, (fan_in, fan_out, p_in, p_out, b_dtype) in enumerate(dims):
        kw, kb = jax.random.split(jax.random.fold_in(key, i))
        bound = 1.0 / jnp.sqrt(float(fan_in))
        w = jax.random.uniform(kw, (fan_in, fan_out), jnp.float32, -bound, bound)
        b = jax.random.uniform(kb, (1, fan_out), jnp.float32, -bound, bound)
        w_p = (jnp.zeros((p_in, p_out), jnp.float32)
               .at[:fan_in, :fan_out].set(w)
               .astype(jnp.bfloat16))
        b_p = (jnp.zeros((1, p_out), jnp.float32)
               .at[:, :fan_out].set(b)
               .astype(b_dtype))
        params += [w_p, b_p]
    return tuple(params)


def ref_forward(x, params, out_dtype=jnp.bfloat16):
    """Pure-JAX mirror of the kernel math (same bf16 casts, f32 accumulate)."""
    w1, b1, w2, b2, w3, b3 = params
    B = x.shape[0]
    x_p = (jnp.zeros((B, P_IN), jnp.bfloat16)
           .at[:, :D_IN].set(x.astype(jnp.bfloat16)))
    h1 = jnp.dot(x_p, w1, preferred_element_type=jnp.float32)
    h1 = jnp.maximum(h1.astype(jnp.bfloat16) + b1, 0)
    h2 = jnp.dot(h1, w2, preferred_element_type=jnp.float32)
    h2 = jnp.maximum(h2.astype(jnp.bfloat16) + b2, 0)
    z = jnp.dot(h2, w3, preferred_element_type=jnp.float32) + b3
    return jax.nn.sigmoid(z).astype(out_dtype)[:, :D_OUT]


if __name__ == "__main__":
    key = jax.random.PRNGKey(0)
    k_x, k_p = jax.random.split(key)
    params = init_params(k_p)

    fwd = jax.jit(functools.partial(gen_forward, tile_b=1024))

    # Small batch (single grid step).
    B = 8
    x = jax.random.normal(k_x, (B, D_IN), dtype=jnp.float32)  # latent codes
    out = jax.block_until_ready(fwd(x, params))
    ref = ref_forward(x, params)
    assert out.shape == (B, D_OUT) and out.dtype == jnp.bfloat16
    assert jnp.allclose(out.astype(jnp.float32), ref.astype(jnp.float32),
                        atol=1e-2, rtol=1e-2), float(
        jnp.max(jnp.abs(out.astype(jnp.float32) - ref.astype(jnp.float32))))

    # Non-multiple-of-8 batch: exercises >=2 grid steps + bounded padding.
    B2 = 20
    x2 = jax.random.normal(jax.random.fold_in(k_x, 1), (B2, D_IN), jnp.float32)
    out2 = jax.block_until_ready(fwd(x2, params))
    ref2 = ref_forward(x2, params)
    assert out2.shape == (B2, D_OUT)
    assert jnp.allclose(out2.astype(jnp.float32), ref2.astype(jnp.float32),
                        atol=1e-2, rtol=1e-2)

    print("KERNEL_OK")
</pallas_src>

<mosaic_0001>
module attributes {stable_mosaic.version = 11 : i64} {
  func.func @gen_kernel(%arg0: i32, %arg1: memref<8x128xbf16, #tpu.memory_space<vmem>>, %arg2: memref<128x256xbf16, #tpu.memory_space<vmem>>, %arg3: memref<1x256xbf16, #tpu.memory_space<vmem>>, %arg4: memref<256x512xbf16, #tpu.memory_space<vmem>>, %arg5: memref<1x512xbf16, #tpu.memory_space<vmem>>, %arg6: memref<512x896xbf16, #tpu.memory_space<vmem>>, %arg7: memref<1x896xf32, #tpu.memory_space<vmem>>, %arg8: memref<8x896xbf16, #tpu.memory_space<vmem>>) attributes {dimension_semantics = [#tpu.dimension_semantics<parallel>], iteration_bounds = array<i64: 1>, scalar_prefetch = 0 : i64, scratch_operands = 0 : i64, tpu.core_type = #tpu.core_type<tc>, window_params = [{transform_indices = @transform_0, window_bounds = array<i64: 8, 128>}, {pipeline_mode = #tpu.pipeline_mode<synchronous>, transform_indices = @transform_1, window_bounds = array<i64: 128, 256>}, {pipeline_mode = #tpu.pipeline_mode<synchronous>, transform_indices = @transform_2, window_bounds = array<i64: 1, 256>}, {pipeline_mode = #tpu.pipeline_mode<synchronous>, transform_indices = @transform_3, window_bounds = array<i64: 256, 512>}, {pipeline_mode = #tpu.pipeline_mode<synchronous>, transform_indices = @transform_4, window_bounds = array<i64: 1, 512>}, {pipeline_mode = #tpu.pipeline_mode<synchronous>, transform_indices = @transform_5, window_bounds = array<i64: 512, 896>}, {pipeline_mode = #tpu.pipeline_mode<synchronous>, transform_indices = @transform_6, window_bounds = array<i64: 1, 896>}, {transform_indices = @transform_7, window_bounds = array<i64: 8, 896>}]} {
    %c0 = arith.constant 0 : index
    %c0_0 = arith.constant 0 : index
    %0 = vector.load %arg1[%c0, %c0_0] : memref<8x128xbf16, #tpu.memory_space<vmem>>, vector<8x128xbf16>
    %c0_1 = arith.constant 0 : index
    %c0_2 = arith.constant 0 : index
    %1 = vector.load %arg2[%c0_1, %c0_2] : memref<128x256xbf16, #tpu.memory_space<vmem>>, vector<128x256xbf16>
    %cst = arith.constant dense<0.000000e+00> : vector<8x256xf32>
    %2 = tpu.matmul %0, %1, %cst {dimension_numbers = #tpu.dot_dimension_numbers<[1], [0], [0], [1], [0, 0, 1, 1], [], []>} : vector<8x128xbf16>, vector<128x256xbf16>, vector<8x256xf32> -> vector<8x256xf32>
    %3 = arith.truncf %2 : vector<8x256xf32> to vector<8x256xbf16>
    %c0_3 = arith.constant 0 : index
    %c0_4 = arith.constant 0 : index
    %4 = vector.load %arg3[%c0_3, %c0_4] : memref<1x256xbf16, #tpu.memory_space<vmem>>, vector<1x256xbf16>
    %5 = vector.broadcast %4 : vector<1x256xbf16> to vector<8x256xbf16>
    %6 = arith.addf %3, %5 : vector<8x256xbf16>
    %cst_5 = arith.constant 0.000000e+00 : bf16
    %7 = vector.broadcast %cst_5 : bf16 to vector<8x256xbf16>
    %8 = arith.maximumf %6, %7 : vector<8x256xbf16>
    %c0_6 = arith.constant 0 : index
    %c0_7 = arith.constant 0 : index
    %9 = vector.load %arg4[%c0_6, %c0_7] : memref<256x512xbf16, #tpu.memory_space<vmem>>, vector<256x512xbf16>
    %cst_8 = arith.constant dense<0.000000e+00> : vector<8x512xf32>
    %10 = tpu.matmul %8, %9, %cst_8 {dimension_numbers = #tpu.dot_dimension_numbers<[1], [0], [0], [1], [0, 0, 1, 1], [], []>} : vector<8x256xbf16>, vector<256x512xbf16>, vector<8x512xf32> -> vector<8x512xf32>
    %11 = arith.truncf %10 : vector<8x512xf32> to vector<8x512xbf16>
    %c0_9 = arith.constant 0 : index
    %c0_10 = arith.constant 0 : index
    %12 = vector.load %arg5[%c0_9, %c0_10] : memref<1x512xbf16, #tpu.memory_space<vmem>>, vector<1x512xbf16>
    %13 = vector.broadcast %12 : vector<1x512xbf16> to vector<8x512xbf16>
    %14 = arith.addf %11, %13 : vector<8x512xbf16>
    %cst_11 = arith.constant 0.000000e+00 : bf16
    %15 = vector.broadcast %cst_11 : bf16 to vector<8x512xbf16>
    %16 = arith.maximumf %14, %15 : vector<8x512xbf16>
    %c0_12 = arith.constant 0 : index
    %c0_13 = arith.constant 0 : index
    %17 = vector.load %arg6[%c0_12, %c0_13] : memref<512x896xbf16, #tpu.memory_space<vmem>>, vector<512x896xbf16>
    %cst_14 = arith.constant dense<0.000000e+00> : vector<8x896xf32>
    %18 = tpu.matmul %16, %17, %cst_14 {dimension_numbers = #tpu.dot_dimension_numbers<[1], [0], [0], [1], [0, 0, 1, 1], [], []>} : vector<8x512xbf16>, vector<512x896xbf16>, vector<8x896xf32> -> vector<8x896xf32>
    %c0_15 = arith.constant 0 : index
    %c0_16 = arith.constant 0 : index
    %19 = vector.load %arg7[%c0_15, %c0_16] : memref<1x896xf32, #tpu.memory_space<vmem>>, vector<1x896xf32>
    %20 = vector.broadcast %19 : vector<1x896xf32> to vector<8x896xf32>
    %21 = arith.addf %18, %20 : vector<8x896xf32>
    %22 = arith.negf %21 : vector<8x896xf32>
    %23 = math.exp %22 : vector<8x896xf32>
    %cst_17 = arith.constant 1.000000e+00 : f32
    %24 = vector.broadcast %cst_17 : f32 to vector<8x896xf32>
    %25 = arith.addf %24, %23 : vector<8x896xf32>
    %26 = arith.divf %24, %25 : vector<8x896xf32>
    %27 = arith.truncf %26 : vector<8x896xf32> to vector<8x896xbf16>
    %c0_18 = arith.constant 0 : index
    %c0_19 = arith.constant 0 : index
    %28 = vector.load %arg8[%c0_18, %c0_19] : memref<8x896xbf16, #tpu.memory_space<vmem>>, vector<8x896xbf16>
    tpu.vector_store %arg8[%c0_18, %c0_19], %27 {strides = array<i32>} : memref<8x896xbf16, #tpu.memory_space<vmem>>, vector<8x896xbf16>,
    return
  }
  func.func @transform_0(%arg0: i32) -> (i32, i32) {
    %c0_i32 = arith.constant 0 : i32
    %c0_i32_0 = arith.constant 0 : i32
    return %arg0, %c0_i32 : i32, i32
  }
  func.func @transform_1(%arg0: i32) -> (i32, i32) {
    %c0_i32 = arith.constant 0 : i32
    %c0_i32_0 = arith.constant 0 : i32
    %c0_i32_1 = arith.constant 0 : i32
    return %c0_i32, %c0_i32_0 : i32, i32
  }
  func.func @transform_2(%arg0: i32) -> (i32, i32) {
    %c0_i32 = arith.constant 0 : i32
    %c0_i32_0 = arith.constant 0 : i32
    %c0_i32_1 = arith.constant 0 : i32
    return %c0_i32, %c0_i32_0 : i32, i32
  }
  func.func @transform_3(%arg0: i32) -> (i32, i32) {
    %c0_i32 = arith.constant 0 : i32
    %c0_i32_0 = arith.constant 0 : i32
    %c0_i32_1 = arith.constant 0 : i32
    return %c0_i32, %c0_i32_0 : i32, i32
  }
  func.func @transform_4(%arg0: i32) -> (i32, i32) {
    %c0_i32 = arith.constant 0 : i32
    %c0_i32_0 = arith.constant 0 : i32
    %c0_i32_1 = arith.constant 0 : i32
    return %c0_i32, %c0_i32_0 : i32, i32
  }
  func.func @transform_5(%arg0: i32) -> (i32, i32) {
    %c0_i32 = arith.constant 0 : i32
    %c0_i32_0 = arith.constant 0 : i32
    %c0_i32_1 = arith.constant 0 : i32
    return %c0_i32, %c0_i32_0 : i32, i32
  }
  func.func @transform_6(%arg0: i32) -> (i32, i32) {
    %c0_i32 = arith.constant 0 : i32
    %c0_i32_0 = arith.constant 0 : i32
    %c0_i32_1 = arith.constant 0 : i32
    return %c0_i32, %c0_i32_0 : i32, i32
  }
  func.func @transform_7(%arg0: i32) -> (i32, i32) {
    %c0_i32 = arith.constant 0 : i32
    %c0_i32_0 = arith.constant 0 : i32
    return %arg0, %c0_i32 : i32, i32
  }
}

</mosaic_0001>

<llo_original>
// kernel: gen_forward.1
$region0: #{gen_forward.1}
  #allocation0 [shape = 'u32[]', space=smem, size = 0x4, offset = 0x4, fixed_abs, tag = 'smem constant byte address 0x4 - core index']
  #allocation1 [shape = 'u32[144,128]{1,0:T(1,128)}', space=vmem, size = 0x12000, scoped, tag = 'internal scratch']
  %s0 = inlined_call_operand.vmem [shape: bf16[8,128], index: 0, kind: input, shape index: {}]
  %s1 = inlined_call_operand.hbm [shape: bf16[128,256], index: 1, kind: input, shape index: {}]
  %s2 = inlined_call_operand.vmem [shape: bf16[1,256], index: 2, kind: input, shape index: {}]
  %s3 = inlined_call_operand.hbm [shape: bf16[256,512], index: 3, kind: input, shape index: {}]
  %s4 = inlined_call_operand.vmem [shape: bf16[1,512], index: 4, kind: input, shape index: {}]
  %s5 = inlined_call_operand.hbm [shape: bf16[512,896], index: 5, kind: input, shape index: {}]
  %s6 = inlined_call_operand.vmem [shape: f32[1,896], index: 6, kind: input, shape index: {}]
  %s7 = inlined_call_operand.hbm [shape: bf16[8,896], index: 7, kind: output, shape index: {}]
  %s8 = sld [smem:[#allocation0]]
  $region50: #{gen_forward.1} parent=0
    _
  %s10 = ssub.s32 1, %s8
  %s11 = scalar_select 0, %s10, %s8
  $region1: #{gen_forward.1} parent=0
    #allocation2 [shape = 'u8[65536]{0}', space=vmem, size = 0x10000, scoped, tag = 'input window, operand 1, single buffered']
    #allocation3 [shape = 's32[1]{0}', space=sflag, size = 0x4, scoped, tag = 'scoped memory for gen_forward.1']
    #allocation4 [shape = 's32[1]{0}', space=sflag, size = 0x4, scoped, tag = 'scoped memory for gen_forward.1']
    #allocation5 [shape = 'u8[262144]{0}', space=vmem, size = 0x40000, scoped, tag = 'input window, operand 3, single buffered']
    #allocation6 [shape = 's32[1]{0}', space=sflag, size = 0x4, scoped, tag = 'scoped memory for gen_forward.1']
    #allocation7 [shape = 'u8[917504]{0}', space=vmem, size = 0xe0000, scoped, tag = 'input window, operand 5, single buffered']
    #allocation8 [shape = 'u8[14336]{0}', space=vmem, size = 0x3800, scoped, tag = 'output window, operand 0, single buffered']
    %12 = vsyncpa [#allocation3], 0
    %13 = vsyncpa [#allocation6], 0
    %14 = vsyncpa [#allocation4], 0
    // Predicated region
    $region2: #{gen_forward.1} parent=1 // pred_check
      _
    $region3: #{gen_forward.1} parent=1 // pred_check_branch
      %16 = sbr.rel (0) target = $region5
    $region4: #{gen_forward.1} parent=1 // pred_region
      _
    $region5: #{gen_forward.1} parent=1 // pred_fallthru
      _
    // Predicated region
    $region6: #{gen_forward.1} parent=1 // pred_check
      _
    $region7: #{gen_forward.1} parent=1 // pred_check_branch
      %18 = sbr.rel (0) target = $region9
    $region8: #{gen_forward.1} parent=1 // pred_region
      %s20 = ssub.s32 2048, 2048
      %21 = vsyncadd [#allocation3], %s20
      %s22 = sshll.u32 [#allocation2], 4
      %s23 = int_to_ptr.vmem [resolvable:$true] %s22
      %28 = dma.hbm_to_vmem [thread:$0]  %s1, 2048, %s23, [#allocation3], 128, 128, 8
    $region9: #{gen_forward.1} parent=1 // pred_fallthru
      _
    // Predicated region
    $region10: #{gen_forward.1} parent=1 // pred_check
      _
    $region11: #{gen_forward.1} parent=1 // pred_check_branch
      %30 = sbr.rel (0) target = $region13
    $region12: #{gen_forward.1} parent=1 // pred_region
      _
    $region13: #{gen_forward.1} parent=1 // pred_fallthru
      _
    // Predicated region
    $region14: #{gen_forward.1} parent=1 // pred_check
      _
    $region15: #{gen_forward.1} parent=1 // pred_check_branch
      %32 = sbr.rel (0) target = $region17
    $region16: #{gen_forward.1} parent=1 // pred_region
      %s34 = ssub.s32 8192, 8192
      %35 = vsyncadd [#allocation6], %s34
      %s36 = sshll.u32 [#allocation5], 4
      %s37 = int_to_ptr.vmem [resolvable:$true] %s36
      %42 = dma.hbm_to_vmem [thread:$0]  %s3, 8192, %s37, [#allocation6], 256, 256, 16
    $region17: #{gen_forward.1} parent=1 // pred_fallthru
      _
    // Predicated region
    $region18: #{gen_forward.1} parent=1 // pred_check
      _
    $region19: #{gen_forward.1} parent=1 // pred_check_branch
      %44 = sbr.rel (0) target = $region21
    $region20: #{gen_forward.1} parent=1 // pred_region
      _
    $region21: #{gen_forward.1} parent=1 // pred_fallthru
      _
    // Predicated region
    $region22: #{gen_forward.1} parent=1 // pred_check
      _
    $region23: #{gen_forward.1} parent=1 // pred_check_branch
      %46 = sbr.rel (0) target = $region25
    $region24: #{gen_forward.1} parent=1 // pred_region
      %s48 = ssub.s32 28672, 28672
      %49 = vsyncadd [#allocation6], %s48
      %s50 = sshll.u32 [#allocation7], 4
      %s51 = int_to_ptr.vmem [resolvable:$true] %s50
      %56 = dma.hbm_to_vmem [thread:$0]  %s5, 28672, %s51, [#allocation6], 448, 448, 28
    $region25: #{gen_forward.1} parent=1 // pred_fallthru
      _
    // Predicated region
    $region26: #{gen_forward.1} parent=1 // pred_check
      _
    $region27: #{gen_forward.1} parent=1 // pred_check_branch
      %58 = sbr.rel (0) target = $region29
    $region28: #{gen_forward.1} parent=1 // pred_region
      _
    $region29: #{gen_forward.1} parent=1 // pred_fallthru
      _
    // Predicated region
    $region30: #{gen_forward.1} parent=1 // pred_check
      _
    $region31: #{gen_forward.1} parent=1 // pred_check_branch
      %60 = sbr.rel (0) target = $region33
    $region32: #{gen_forward.1} parent=1 // pred_region
      %61 = dma.done [#allocation3], 2048
    $region33: #{gen_forward.1} parent=1 // pred_fallthru
      _
    // Predicated region
    $region34: #{gen_forward.1} parent=1 // pred_check
      _
    $region35: #{gen_forward.1} parent=1 // pred_check_branch
      %63 = sbr.rel (0) target = $region37
    $region36: #{gen_forward.1} parent=1 // pred_region
      %64 = dma.done [#allocation6], 8192
    $region37: #{gen_forward.1} parent=1 // pred_fallthru
      _
    // Predicated region
    $region38: #{gen_forward.1} parent=1 // pred_check
      _
    $region39: #{gen_forward.1} parent=1 // pred_check_branch
      %66 = sbr.rel (0) target = $region41
    $region40: #{gen_forward.1} parent=1 // pred_region
      %67 = dma.done [#allocation6], 28672
    $region41: #{gen_forward.1} parent=1 // pred_fallthru
      _
    %v69 = vld [vmem:[%s0] sm:$0xf]
    %v70 = vld [vmem:[#allocation2] sm:$0xff]
    %v71 = vld [vmem:[#allocation2 + $0x8] sm:$0xff]
    %v72 = vld [vmem:[#allocation2 + $0x10] sm:$0xff]
    %v73 = vld [vmem:[#allocation2 + $0x18] sm:$0xff]
    %v74 = vld [vmem:[#allocation2 + $0x20] sm:$0xff]
    %v75 = vld [vmem:[#allocation2 + $0x28] sm:$0xff]
    %v76 = vld [vmem:[#allocation2 + $0x30] sm:$0xff]
    %v77 = vld [vmem:[#allocation2 + $0x38] sm:$0xff]
    %v78 = vld [vmem:[#allocation2 + $0x40] sm:$0xff]
    %v79 = vld [vmem:[#allocation2 + $0x48] sm:$0xff]
    %v80 = vld [vmem:[#allocation2 + $0x50] sm:$0xff]
    %v81 = vld [vmem:[#allocation2 + $0x58] sm:$0xff]
    %v82 = vld [vmem:[#allocation2 + $0x60] sm:$0xff]
    %v83 = vld [vmem:[#allocation2 + $0x68] sm:$0xff]
    %v84 = vld [vmem:[#allocation2 + $0x70] sm:$0xff]
    %v85 = vld [vmem:[#allocation2 + $0x78] sm:$0xff]
    %v102 = vunpack.c.l.b16 %v70
    %v103 = vunpack.c.h.b16 %v70
    %v104 = vunpack.c.l.b16 %v71
    %v105 = vunpack.c.h.b16 %v71
    %v106 = vunpack.c.l.b16 %v72
    %v107 = vunpack.c.h.b16 %v72
    %v108 = vunpack.c.l.b16 %v73
    %v109 = vunpack.c.h.b16 %v73
    %v110 = vunpack.c.l.b16 %v74
    %v111 = vunpack.c.h.b16 %v74
    %v112 = vunpack.c.l.b16 %v75
    %v113 = vunpack.c.h.b16 %v75
    %v114 = vunpack.c.l.b16 %v76
    %v115 = vunpack.c.h.b16 %v76
    %v116 = vunpack.c.l.b16 %v77
    %v117 = vunpack.c.h.b16 %v77
    %v118 = vunpack.c.l.b16 %v78
    %v119 = vunpack.c.h.b16 %v78
    %v120 = vunpack.c.l.b16 %v79
    %v121 = vunpack.c.h.b16 %v79
    %v122 = vunpack.c.l.b16 %v80
    %v123 = vunpack.c.h.b16 %v80
    %v124 = vunpack.c.l.b16 %v81
    %v125 = vunpack.c.h.b16 %v81
    %v126 = vunpack.c.l.b16 %v82
    %v127 = vunpack.c.h.b16 %v82
    %v128 = vunpack.c.l.b16 %v83
    %v129 = vunpack.c.h.b16 %v83
    %v130 = vunpack.c.l.b16 %v84
    %v131 = vunpack.c.h.b16 %v84
    %v132 = vunpack.c.l.b16 %v85
    %v133 = vunpack.c.h.b16 %v85
    %v134 = vpack.c.b16 %v104, %v102
    %v135 = vpack.c.b16 %v105, %v103
    %v136 = vpack.c.b16 %v108, %v106
    %v137 = vpack.c.b16 %v109, %v107
    %v138 = vpack.c.b16 %v112, %v110
    %v139 = vpack.c.b16 %v113, %v111
    %v140 = vpack.c.b16 %v116, %v114
    %v141 = vpack.c.b16 %v117, %v115
    %v142 = vpack.c.b16 %v120, %v118
    %v143 = vpack.c.b16 %v121, %v119
    %v144 = vpack.c.b16 %v124, %v122
    %v145 = vpack.c.b16 %v125, %v123
    %v146 = vpack.c.b16 %v128, %v126
    %v147 = vpack.c.b16 %v129, %v127
    %v148 = vpack.c.b16 %v132, %v130
    %v149 = vpack.c.b16 %v133, %v131
    %166 = vmatprep.subr.bf16.mxu0 %v135
    %167 = vmatpush1.bf16.msra.mxu0 %v134
    %168 = vmatprep.subr.bf16.mxu0 %v137
    %169 = vmatpush1.bf16.msra.mxu0 %v136
    %170 = vmatprep.subr.bf16.mxu0 %v139
    %171 = vmatpush1.bf16.msra.mxu0 %v138
    %172 = vmatprep.subr.bf16.mxu0 %v141
    %173 = vmatpush1.bf16.msra.mxu0 %v140
    %174 = vmatprep.subr.bf16.mxu0 %v143
    %175 = vmatpush1.bf16.msra.mxu0 %v142
    %176 = vmatprep.subr.bf16.mxu0 %v145
    %177 = vmatpush1.bf16.msra.mxu0 %v144
    %178 = vmatprep.subr.bf16.mxu0 %v147
    %179 = vmatpush1.bf16.msra.mxu0 %v146
    %180 = vmatprep.subr.bf16.mxu0 %v149
    %181 = vmatpush1.bf16.msra.mxu0 %v148
    %182 = vmatprep.subr.bf16.mxu0 0
    %183 = vmatpush1.bf16.msra.mxu0 0
    %184 = vmatprep.subr.bf16.mxu0 0
    %185 = vmatpush1.bf16.msra.mxu0 0
    %186 = vmatprep.subr.bf16.mxu0 0
    %187 = vmatpush1.bf16.msra.mxu0 0
    %188 = vmatprep.subr.bf16.mxu0 0
    %189 = vmatpush1.bf16.msra.mxu0 0
    %190 = vmatprep.subr.bf16.mxu0 0
    %191 = vmatpush1.bf16.msra.mxu0 0
    %192 = vmatprep.subr.bf16.mxu0 0
    %193 = vmatpush1.bf16.msra.mxu0 0
    %194 = vmatprep.subr.bf16.mxu0 0
    %195 = vmatpush1.bf16.msra.mxu0 0
    %196 = vmatprep.subr.bf16.mxu0 0
    %197 = vmatpush1.bf16.msra.mxu0 0
    %198 = vmatprep.mubr.bf16.mxu0 0
    %199 = vmatmul.mubr.bf16.gmra.mrb[0].mxu0 %v69
    %v200 = vpop.f32.mrb[0].mxu0
    %v201 = vadd.f32 0.0, %v200
    %v202 = vpop.f32.mrb[0].mxu0
    %v203 = vadd.f32 0.0, %v202
    %v204 = vpop.f32.mrb[0].mxu0
    %v205 = vpop.f32.mrb[0].mxu0
    %206 = vdwg.mxu0
    %v207 = vpack.c.bf16 %v201, %v201
    %v208 = vpack.c.bf16 %v203, %v203
    %v209 = vld [vmem:[%s2] sm:$0x3]
    %v212 = vunpack.c.l.s4 1966171168
    %v213 = vunpack.c.0.s8 %v212
    %v214 = vlaneseq
    %v215 = vshrl.u32 %v214, 7
    %v216 = vsub.s32 %v213, %v215
    %v217 = vrot.slane %v209, %v216
    %v218 = vcombine.high %v217, %v217
    %v220 = vunpack.c.l.s4 1966171168
    %v221 = vunpack.c.0.s8 %v220
    %v222 = vlaneseq
    %v223 = vshrl.u32 %v222, 7
    %v224 = vsub.s32 %v221, %v223
    %v225 = vrot.slane %v217, %v224
    %v227 = vunpack.c.l.s4 1966171168
    %v228 = vunpack.c.0.s8 %v227
    %v229 = vlaneseq
    %v230 = vshrl.u32 %v229, 7
    %v231 = vsub.s32 %v228, %v230
    %v232 = vrot.slane %v218, %v231
    %v234 = vpack.i.b16 %v225, %v225
    %v236 = vlaneseq
    %v237 = vshrl.u32 %v236, 7
    %v238 = vsub.s32 0, %v237
    %v239 = vrot.slane %v234, %v238
    %v241 = vpack.i.b16 %v232, %v232
    %v243 = vlaneseq
    %v244 = vshrl.u32 %v243, 7
    %v245 = vsub.s32 0, %v244
    %v246 = vrot.slane %v241, %v245
    %v247 = vadd.bf16 %v207, %v239
    %v248 = vadd.bf16 %v208, %v246
    %v249 = vmax.bf16 %v247, 0
    %v250 = vmax.bf16 %v248, 0
    %v251 = vld [vmem:[#allocation5] sm:$0xff]
    %v252 = vld [vmem:[#allocation5 + $0x8] sm:$0xff]
    %v253 = vld [vmem:[#allocation5 + $0x10] sm:$0xff]
    %v254 = vld [vmem:[#allocation5 + $0x18] sm:$0xff]
    %v255 = vld [vmem:[#allocation5 + $0x20] sm:$0xff]
    %v256 = vld [vmem:[#allocation5 + $0x28] sm:$0xff]
    %v257 = vld [vmem:[#allocation5 + $0x30] sm:$0xff]
    %v258 = vld [vmem:[#allocation5 + $0x38] sm:$0xff]
    %v259 = vld [vmem:[#allocation5 + $0x40] sm:$0xff]
    %v260 = vld [vmem:[#allocation5 + $0x48] sm:$0xff]
    %v261 = vld [vmem:[#allocation5 + $0x50] sm:$0xff]
    %v262 = vld [vmem:[#allocation5 + $0x58] sm:$0xff]
    %v263 = vld [vmem:[#allocation5 + $0x60] sm:$0xff]
    %v264 = vld [vmem:[#allocation5 + $0x68] sm:$0xff]
    %v265 = vld [vmem:[#allocation5 + $0x70] sm:$0xff]
    %v266 = vld [vmem:[#allocation5 + $0x78] sm:$0xff]
    %v267 = vld [vmem:[#allocation5 + $0x80] sm:$0xff]
    %v268 = vld [vmem:[#allocation5 + $0x88] sm:$0xff]
    %v269 = vld [vmem:[#allocation5 + $0x90] sm:$0xff]
    %v270 = vld [vmem:[#allocation5 + $0x98] sm:$0xff]
    %v271 = vld [vmem:[#allocation5 + $0xa0] sm:$0xff]
    %v272 = vld [vmem:[#allocation5 + $0xa8] sm:$0xff]
    %v273 = vld [vmem:[#allocation5 + $0xb0] sm:$0xff]
    %v274 = vld [vmem:[#allocation5 + $0xb8] sm:$0xff]
    %v275 = vld [vmem:[#allocation5 + $0xc0] sm:$0xff]
    %v276 = vld [vmem:[#allocation5 + $0xc8] sm:$0xff]
    %v277 = vld [vmem:[#allocation5 + $0xd0] sm:$0xff]
    %v278 = vld [vmem:[#allocation5 + $0xd8] sm:$0xff]
    %v279 = vld [vmem:[#allocation5 + $0xe0] sm:$0xff]
    %v280 = vld [vmem:[#allocation5 + $0xe8] sm:$0xff]
    %v281 = vld [vmem:[#allocation5 + $0xf0] sm:$0xff]
    %v282 = vld [vmem:[#allocation5 + $0xf8] sm:$0xff]
    %v283 = vld [vmem:[#allocation5 + $0x100] sm:$0xff]
    %v284 = vld [vmem:[#allocation5 + $0x108] sm:$0xff]
    %v285 = vld [vmem:[#allocation5 + $0x110] sm:$0xff]
    %v286 = vld [vmem:[#allocation5 + $0x118] sm:$0xff]
    %v287 = vld [vmem:[#allocation5 + $0x120] sm:$0xff]
    %v288 = vld [vmem:[#allocation5 + $0x128] sm:$0xff]
    %v289 = vld [vmem:[#allocation5 + $0x130] sm:$0xff]
    %v290 = vld [vmem:[#allocation5 + $0x138] sm:$0xff]
    %v291 = vld [vmem:[#allocation5 + $0x140] sm:$0xff]
    %v292 = vld [vmem:[#allocation5 + $0x148] sm:$0xff]
    %v293 = vld [vmem:[#allocation5 + $0x150] sm:$0xff]
    %v294 = vld [vmem:[#allocation5 + $0x158] sm:$0xff]
    %v295 = vld [vmem:[#allocation5 + $0x160] sm:$0xff]
    %v296 = vld [vmem:[#allocation5 + $0x168] sm:$0xff]
    %v297 = vld [vmem:[#allocation5 + $0x170] sm:$0xff]
    %v298 = vld [vmem:[#allocation5 + $0x178] sm:$0xff]
    %v299 = vld [vmem:[#allocation5 + $0x180] sm:$0xff]
    %v300 = vld [vmem:[#allocation5 + $0x188] sm:$0xff]
    %v301 = vld [vmem:[#allocation5 + $0x190] sm:$0xff]
    %v302 = vld [vmem:[#allocation5 + $0x198] sm:$0xff]
    %v303 = vld [vmem:[#allocation5 + $0x1a0] sm:$0xff]
    %v304 = vld [vmem:[#allocation5 + $0x1a8] sm:$0xff]
    %v305 = vld [vmem:[#allocation5 + $0x1b0] sm:$0xff]
    %v306 = vld [vmem:[#allocation5 + $0x1b8] sm:$0xff]
    %v307 = vld [vmem:[#allocation5 + $0x1c0] sm:$0xff]
    %v308 = vld [vmem:[#allocation5 + $0x1c8] sm:$0xff]
    %v309 = vld [vmem:[#allocation5 + $0x1d0] sm:$0xff]
    %v310 = vld [vmem:[#allocation5 + $0x1d8] sm:$0xff]
    %v311 = vld [vmem:[#allocation5 + $0x1e0] sm:$0xff]
    %v312 = vld [vmem:[#allocation5 + $0x1e8] sm:$0xff]
    %v313 = vld [vmem:[#allocation5 + $0x1f0] sm:$0xff]
    %v314 = vld [vmem:[#allocation5 + $0x1f8] sm:$0xff]
    %v379 = vunpack.c.l.b16 %v251
    %v380 = vunpack.c.h.b16 %v251
    %v381 = vunpack.c.l.b16 %v252
    %v382 = vunpack.c.h.b16 %v252
    %v383 = vunpack.c.l.b16 %v253
    %v384 = vunpack.c.h.b16 %v253
    %v385 = vunpack.c.l.b16 %v254
    %v386 = vunpack.c.h.b16 %v254
    %v387 = vunpack.c.l.b16 %v255
    %v388 = vunpack.c.h.b16 %v255
    %v389 = vunpack.c.l.b16 %v256
    %v390 = vunpack.c.h.b16 %v256
    %v391 = vunpack.c.l.b16 %v257
    %v392 = vunpack.c.h.b16 %v257
    %v393 = vunpack.c.l.b16 %v258
    %v394 = vunpack.c.h.b16 %v258
    %v395 = vunpack.c.l.b16 %v259
    %v396 = vunpack.c.h.b16 %v259
    %v397 = vunpack.c.l.b16 %v260
    %v398 = vunpack.c.h.b16 %v260
    %v399 = vunpack.c.l.b16 %v261
    %v400 = vunpack.c.h.b16 %v261
    %v401 = vunpack.c.l.b16 %v262
    %v402 = vunpack.c.h.b16 %v262
    %v403 = vunpack.c.l.b16 %v263
    %v404 = vunpack.c.h.b16 %v263
    %v405 = vunpack.c.l.b16 %v264
    %v406 = vunpack.c.h.b16 %v264
    %v407 = vunpack.c.l.b16 %v265
    %v408 = vunpack.c.h.b16 %v265
    %v409 = vunpack.c.l.b16 %v266
    %v410 = vunpack.c.h.b16 %v266
    %v411 = vunpack.c.l.b16 %v267
    %v412 = vunpack.c.h.b16 %v267
    %v413 = vunpack.c.l.b16 %v268
    %v414 = vunpack.c.h.b16 %v268
    %v415 = vunpack.c.l.b16 %v269
    %v416 = vunpack.c.h.b16 %v269
    %v417 = vunpack.c.l.b16 %v270
    %v418 = vunpack.c.h.b16 %v270
    %v419 = vunpack.c.l.b16 %v271
    %v420 = vunpack.c.h.b16 %v271
    %v421 = vunpack.c.l.b16 %v272
    %v422 = vunpack.c.h.b16 %v272
    %v423 = vunpack.c.l.b16 %v273
    %v424 = vunpack.c.h.b16 %v273
    %v425 = vunpack.c.l.b16 %v274
    %v426 = vunpack.c.h.b16 %v274
    %v427 = vunpack.c.l.b16 %v275
    %v428 = vunpack.c.h.b16 %v275
    %v429 = vunpack.c.l.b16 %v276
    %v430 = vunpack.c.h.b16 %v276
    %v431 = vunpack.c.l.b16 %v277
    %v432 = vunpack.c.h.b16 %v277
    %v433 = vunpack.c.l.b16 %v278
    %v434 = vunpack.c.h.b16 %v278
    %v435 = vunpack.c.l.b16 %v279
    %v436 = vunpack.c.h.b16 %v279
    %v437 = vunpack.c.l.b16 %v280
    %v438 = vunpack.c.h.b16 %v280
    %v439 = vunpack.c.l.b16 %v281
    %v440 = vunpack.c.h.b16 %v281
    %v441 = vunpack.c.l.b16 %v282
    %v442 = vunpack.c.h.b16 %v282
    %v443 = vunpack.c.l.b16 %v283
    %v444 = vunpack.c.h.b16 %v283
    %v445 = vunpack.c.l.b16 %v284
    %v446 = vunpack.c.h.b16 %v284
    %v447 = vunpack.c.l.b16 %v285
    %v448 = vunpack.c.h.b16 %v285
    %v449 = vunpack.c.l.b16 %v286
    %v450 = vunpack.c.h.b16 %v286
    %v451 = vunpack.c.l.b16 %v287
    %v452 = vunpack.c.h.b16 %v287
    %v453 = vunpack.c.l.b16 %v288
    %v454 = vunpack.c.h.b16 %v288
    %v455 = vunpack.c.l.b16 %v289
    %v456 = vunpack.c.h.b16 %v289
    %v457 = vunpack.c.l.b16 %v290
    %v458 = vunpack.c.h.b16 %v290
    %v459 = vunpack.c.l.b16 %v291
    %v460 = vunpack.c.h.b16 %v291
    %v461 = vunpack.c.l.b16 %v292
    %v462 = vunpack.c.h.b16 %v292
    %v463 = vunpack.c.l.b16 %v293
    %v464 = vunpack.c.h.b16 %v293
    %v465 = vunpack.c.l.b16 %v294
    %v466 = vunpack.c.h.b16 %v294
    %v467 = vunpack.c.l.b16 %v295
    %v468 = vunpack.c.h.b16 %v295
    %v469 = vunpack.c.l.b16 %v296
    %v470 = vunpack.c.h.b16 %v296
    %v471 = vunpack.c.l.b16 %v297
    %v472 = vunpack.c.h.b16 %v297
    %v473 = vunpack.c.l.b16 %v298
    %v474 = vunpack.c.h.b16 %v298
    %v475 = vunpack.c.l.b16 %v299
    %v476 = vunpack.c.h.b16 %v299
    %v477 = vunpack.c.l.b16 %v300
    %v478 = vunpack.c.h.b16 %v300
    %v479 = vunpack.c.l.b16 %v301
    %v480 = vunpack.c.h.b16 %v301
    %v481 = vunpack.c.l.b16 %v302
    %v482 = vunpack.c.h.b16 %v302
    %v483 = vunpack.c.l.b16 %v303
    %v484 = vunpack.c.h.b16 %v303
    %v485 = vunpack.c.l.b16 %v304
    %v486 = vunpack.c.h.b16 %v304
    %v487 = vunpack.c.l.b16 %v305
    %v488 = vunpack.c.h.b16 %v305
    %v489 = vunpack.c.l.b16 %v306
    %v490 = vunpack.c.h.b16 %v306
    %v491 = vunpack.c.l.b16 %v307
    %v492 = vunpack.c.h.b16 %v307
    %v493 = vunpack.c.l.b16 %v308
    %v494 = vunpack.c.h.b16 %v308
    %v495 = vunpack.c.l.b16 %v309
    %v496 = vunpack.c.h.b16 %v309
    %v497 = vunpack.c.l.b16 %v310
    %v498 = vunpack.c.h.b16 %v310
    %v499 = vunpack.c.l.b16 %v311
    %v500 = vunpack.c.h.b16 %v311
    %v501 = vunpack.c.l.b16 %v312
    %v502 = vunpack.c.h.b16 %v312
    %v503 = vunpack.c.l.b16 %v313
    %v504 = vunpack.c.h.b16 %v313
    %v505 = vunpack.c.l.b16 %v314
    %v506 = vunpack.c.h.b16 %v314
    %v507 = vpack.c.b16 %v383, %v379
    %v508 = vpack.c.b16 %v384, %v380
    %v509 = vpack.c.b16 %v385, %v381
    %v510 = vpack.c.b16 %v386, %v382
    %v511 = vpack.c.b16 %v391, %v387
    %v512 = vpack.c.b16 %v392, %v388
    %v513 = vpack.c.b16 %v393, %v389
    %v514 = vpack.c.b16 %v394, %v390
    %v515 = vpack.c.b16 %v399, %v395
    %v516 = vpack.c.b16 %v400, %v396
    %v517 = vpack.c.b16 %v401, %v397
    %v518 = vpack.c.b16 %v402, %v398
    %v519 = vpack.c.b16 %v407, %v403
    %v520 = vpack.c.b16 %v408, %v404
    %v521 = vpack.c.b16 %v409, %v405
    %v522 = vpack.c.b16 %v410, %v406
    %v523 = vpack.c.b16 %v415, %v411
    %v524 = vpack.c.b16 %v416, %v412
    %v525 = vpack.c.b16 %v417, %v413
    %v526 = vpack.c.b16 %v418, %v414
    %v527 = vpack.c.b16 %v423, %v419
    %v528 = vpack.c.b16 %v424, %v420
    %v529 = vpack.c.b16 %v425, %v421
    %v530 = vpack.c.b16 %v426, %v422
    %v531 = vpack.c.b16 %v431, %v427
    %v532 = vpack.c.b16 %v432, %v428
    %v533 = vpack.c.b16 %v433, %v429
    %v534 = vpack.c.b16 %v434, %v430
    %v535 = vpack.c.b16 %v439, %v435
    %v536 = vpack.c.b16 %v440, %v436
    %v537 = vpack.c.b16 %v441, %v437
    %v538 = vpack.c.b16 %v442, %v438
    %v539 = vpack.c.b16 %v447, %v443
    %v540 = vpack.c.b16 %v448, %v444
    %v541 = vpack.c.b16 %v449, %v445
    %v542 = vpack.c.b16 %v450, %v446
    %v543 = vpack.c.b16 %v455, %v451
    %v544 = vpack.c.b16 %v456, %v452
    %v545 = vpack.c.b16 %v457, %v453
    %v546 = vpack.c.b16 %v458, %v454
    %v547 = vpack.c.b16 %v463, %v459
    %v548 = vpack.c.b16 %v464, %v460
    %v549 = vpack.c.b16 %v465, %v461
    %v550 = vpack.c.b16 %v466, %v462
    %v551 = vpack.c.b16 %v471, %v467
    %v552 = vpack.c.b16 %v472, %v468
    %v553 = vpack.c.b16 %v473, %v469
    %v554 = vpack.c.b16 %v474, %v470
    %v555 = vpack.c.b16 %v479, %v475
    %v556 = vpack.c.b16 %v480, %v476
    %v557 = vpack.c.b16 %v481, %v477
    %v558 = vpack.c.b16 %v482, %v478
    %v559 = vpack.c.b16 %v487, %v483
    %v560 = vpack.c.b16 %v488, %v484
    %v561 = vpack.c.b16 %v489, %v485
    %v562 = vpack.c.b16 %v490, %v486
    %v563 = vpack.c.b16 %v495, %v491
    %v564 = vpack.c.b16 %v496, %v492
    %v565 = vpack.c.b16 %v497, %v493
    %v566 = vpack.c.b16 %v498, %v494
    %v567 = vpack.c.b16 %v503, %v499
    %v568 = vpack.c.b16 %v504, %v500
    %v569 = vpack.c.b16 %v505, %v501
    %v570 = vpack.c.b16 %v506, %v502
    %635 = vmatprep.subr.bf16.mxu0 %v508
    %636 = vmatpush1.bf16.msra.mxu0 %v507
    %637 = vmatprep.subr.bf16.mxu0 %v512
    %638 = vmatpush1.bf16.msra.mxu0 %v511
    %639 = vmatprep.subr.bf16.mxu0 %v516
    %640 = vmatpush1.bf16.msra.mxu0 %v515
    %641 = vmatprep.subr.bf16.mxu0 %v520
    %642 = vmatpush1.bf16.msra.mxu0 %v519
    %643 = vmatprep.subr.bf16.mxu0 %v524
    %644 = vmatpush1.bf16.msra.mxu0 %v523
    %645 = vmatprep.subr.bf16.mxu0 %v528
    %646 = vmatpush1.bf16.msra.mxu0 %v527
    %647 = vmatprep.subr.bf16.mxu0 %v532
    %648 = vmatpush1.bf16.msra.mxu0 %v531
    %649 = vmatprep.subr.bf16.mxu0 %v536
    %650 = vmatpush1.bf16.msra.mxu0 %v535
    %651 = vmatprep.subr.bf16.mxu0 %v540
    %652 = vmatpush1.bf16.msra.mxu0 %v539
    %653 = vmatprep.subr.bf16.mxu0 %v544
    %654 = vmatpush1.bf16.msra.mxu0 %v543
    %655 = vmatprep.subr.bf16.mxu0 %v548
    %656 = vmatpush1.bf16.msra.mxu0 %v547
    %657 = vmatprep.subr.bf16.mxu0 %v552
    %658 = vmatpush1.bf16.msra.mxu0 %v551
    %659 = vmatprep.subr.bf16.mxu0 %v556
    %660 = vmatpush1.bf16.msra.mxu0 %v555
    %661 = vmatprep.subr.bf16.mxu0 %v560
    %662 = vmatpush1.bf16.msra.mxu0 %v559
    %663 = vmatprep.subr.bf16.mxu0 %v564
    %664 = vmatpush1.bf16.msra.mxu0 %v563
    %665 = vmatprep.subr.bf16.mxu0 %v568
    %666 = vmatpush1.bf16.msra.mxu0 %v567
    %667 = vmatprep.mubr.bf16.mxu0 %v250
    %668 = vmatmul.mubr.bf16.gmra.mrb[0].mxu0 %v249
    %v669 = vpop.f32.mrb[0].mxu0
    %v670 = vadd.f32 0.0, %v669
    %v671 = vpop.f32.mrb[0].mxu0
    %v672 = vadd.f32 0.0, %v671
    %v673 = vpop.f32.mrb[0].mxu0
    %v674 = vpop.f32.mrb[0].mxu0
    %675 = vdwg.mxu0
    %676 = vmatprep.subr.bf16.mxu0 %v510
    %677 = vmatpush1.bf16.msra.mxu0 %v509
    %678 = vmatprep.subr.bf16.mxu0 %v514
    %679 = vmatpush1.bf16.msra.mxu0 %v513
    %680 = vmatprep.subr.bf16.mxu0 %v518
    %681 = vmatpush1.bf16.msra.mxu0 %v517
    %682 = vmatprep.subr.bf16.mxu0 %v522
    %683 = vmatpush1.bf16.msra.mxu0 %v521
    %684 = vmatprep.subr.bf16.mxu0 %v526
    %685 = vmatpush1.bf16.msra.mxu0 %v525
    %686 = vmatprep.subr.bf16.mxu0 %v530
    %687 = vmatpush1.bf16.msra.mxu0 %v529
    %688 = vmatprep.subr.bf16.mxu0 %v534
    %689 = vmatpush1.bf16.msra.mxu0 %v533
    %690 = vmatprep.subr.bf16.mxu0 %v538
    %691 = vmatpush1.bf16.msra.mxu0 %v537
    %692 = vmatprep.subr.bf16.mxu0 %v542
    %693 = vmatpush1.bf16.msra.mxu0 %v541
    %694 = vmatprep.subr.bf16.mxu0 %v546
    %695 = vmatpush1.bf16.msra.mxu0 %v545
    %696 = vmatprep.subr.bf16.mxu0 %v550
    %697 = vmatpush1.bf16.msra.mxu0 %v549
    %698 = vmatprep.subr.bf16.mxu0 %v554
    %699 = vmatpush1.bf16.msra.mxu0 %v553
    %700 = vmatprep.subr.bf16.mxu0 %v558
    %701 = vmatpush1.bf16.msra.mxu0 %v557
    %702 = vmatprep.subr.bf16.mxu0 %v562
    %703 = vmatpush1.bf16.msra.mxu0 %v561
    %704 = vmatprep.subr.bf16.mxu0 %v566
    %705 = vmatpush1.bf16.msra.mxu0 %v565
    %706 = vmatprep.subr.bf16.mxu0 %v570
    %707 = vmatpush1.bf16.msra.mxu0 %v569
    %708 = vmatprep.mubr.bf16.mxu0 %v250
    %709 = vmatmul.mubr.bf16.gmra.mrb[0].mxu0 %v249
    %v710 = vpop.f32.mrb[0].mxu0
    %v711 = vadd.f32 0.0, %v710
    %v712 = vpop.f32.mrb[0].mxu0
    %v713 = vadd.f32 0.0, %v712
    %v714 = vpop.f32.mrb[0].mxu0
    %v715 = vpop.f32.mrb[0].mxu0
    %716 = vdwg.mxu0
    %v717 = vpack.c.bf16 %v670, %v670
    %v718 = vpack.c.bf16 %v672, %v672
    %v719 = vpack.c.bf16 %v711, %v711
    %v720 = vpack.c.bf16 %v713, %v713
    %v721 = vld [vmem:[%s4] sm:$0xf]
    %v724 = vunpack.c.l.s4 1966171168
    %v725 = vunpack.c.0.s8 %v724
    %v726 = vlaneseq
    %v727 = vshrl.u32 %v726, 7
    %v728 = vsub.s32 %v725, %v727
    %v729 = vrot.slane %v721, %v728
    %v730 = vcombine.high %v729, %v729
    %v732 = vunpack.c.l.s4 1966171168
    %v733 = vunpack.c.0.s8 %v732
    %v734 = vlaneseq
    %v735 = vshrl.u32 %v734, 7
    %v736 = vsub.s32 %v733, %v735
    %v737 = vrot.slane %v729, %v736
    %v739 = vunpack.c.l.s4 1966171168
    %v740 = vunpack.c.0.s8 %v739
    %v741 = vlaneseq
    %v742 = vshrl.u32 %v741, 7
    %v743 = vsub.s32 %v740, %v742
    %v744 = vrot.slane %v730, %v743
    %v745 = vcombine.high %v737, %v737
    %v746 = vcombine.high %v744, %v744
    %v748 = vpack.i.b16 %v737, %v737
    %v750 = vlaneseq
    %v751 = vshrl.u32 %v750, 7
    %v752 = vsub.s32 0, %v751
    %v753 = vrot.slane %v748, %v752
    %v755 = vpack.i.b16 %v744, %v744
    %v757 = vlaneseq
    %v758 = vshrl.u32 %v757, 7
    %v759 = vsub.s32 0, %v758
    %v760 = vrot.slane %v755, %v759
    %v762 = vpack.i.b16 %v745, %v745
    %v764 = vlaneseq
    %v765 = vshrl.u32 %v764, 7
    %v766 = vsub.s32 0, %v765
    %v767 = vrot.slane %v762, %v766
    %v769 = vpack.i.b16 %v746, %v746
    %v771 = vlaneseq
    %v772 = vshrl.u32 %v771, 7
    %v773 = vsub.s32 0, %v772
    %v774 = vrot.slane %v769, %v773
    %v775 = vadd.bf16 %v717, %v753
    %v776 = vadd.bf16 %v718, %v760
    %v777 = vadd.bf16 %v719, %v767
    %v778 = vadd.bf16 %v720, %v774
    %v779 = vmax.bf16 %v775, 0
    %v780 = vmax.bf16 %v776, 0
    %v781 = vmax.bf16 %v777, 0
    %v782 = vmax.bf16 %v778, 0
    %v783 = vld [vmem:[#allocation7] sm:$0xff]
    %v784 = vld [vmem:[#allocation7 + $0x8] sm:$0xff]
    %v785 = vld [vmem:[#allocation7 + $0x10] sm:$0xff]
    %v786 = vld [vmem:[#allocation7 + $0x18] sm:$0xf]
    %v787 = vld [vmem:[#allocation7 + $0x1c] sm:$0xff]
    %v788 = vld [vmem:[#allocation7 + $0x24] sm:$0xff]
    %v789 = vld [vmem:[#allocation7 + $0x2c] sm:$0xff]
    %v790 = vld [vmem:[#allocation7 + $0x34] sm:$0xf]
    %v791 = vld [vmem:[#allocation7 + $0x38] sm:$0xff]
    %v792 = vld [vmem:[#allocation7 + $0x40] sm:$0xff]
    %v793 = vld [vmem:[#allocation7 + $0x48] sm:$0xff]
    %v794 = vld [vmem:[#allocation7 + $0x50] sm:$0xf]
    %v795 = vld [vmem:[#allocation7 + $0x54] sm:$0xff]
    %v796 = vld [vmem:[#allocation7 + $0x5c] sm:$0xff]
    %v797 = vld [vmem:[#allocation7 + $0x64] sm:$0xff]
    %v798 = vld [vmem:[#allocation7 + $0x6c] sm:$0xf]
    %v799 = vld [vmem:[#allocation7 + $0x70] sm:$0xff]
    %v800 = vld [vmem:[#allocation7 + $0x78] sm:$0xff]
    %v801 = vld [vmem:[#allocation7 + $0x80] sm:$0xff]
    %v802 = vld [vmem:[#allocation7 + $0x88] sm:$0xf]
    %v803 = vld [vmem:[#allocation7 + $0x8c] sm:$0xff]
    %v804 = vld [vmem:[#allocation7 + $0x94] sm:$0xff]
    %v805 = vld [vmem:[#allocation7 + $0x9c] sm:$0xff]
    %v806 = vld [vmem:[#allocation7 + $0xa4] sm:$0xf]
    %v807 = vld [vmem:[#allocation7 + $0xa8] sm:$0xff]
    %v808 = vld [vmem:[#allocation7 + $0xb0] sm:$0xff]
    %v809 = vld [vmem:[#allocation7 + $0xb8] sm:$0xff]
    %v810 = vld [vmem:[#allocation7 + $0xc0] sm:$0xf]
    %v811 = vld [vmem:[#allocation7 + $0xc4] sm:$0xff]
    %v812 = vld [vmem:[#allocation7 + $0xcc] sm:$0xff]
    %v813 = vld [vmem:[#allocation7 + $0xd4] sm:$0xff]
    %v814 = vld [vmem:[#allocation7 + $0xdc] sm:$0xf]
    %v815 = vld [vmem:[#allocation7 + $0xe0] sm:$0xff]
    %v816 = vld [vmem:[#allocation7 + $0xe8] sm:$0xff]
    %v817 = vld [vmem:[#allocation7 + $0xf0] sm:$0xff]
    %v818 = vld [vmem:[#allocation7 + $0xf8] sm:$0xf]
    %v819 = vld [vmem:[#allocation7 + $0xfc] sm:$0xff]
    %v820 = vld [vmem:[#allocation7 + $0x104] sm:$0xff]
    %v821 = vld [vmem:[#allocation7 + $0x10c] sm:$0xff]
    %v822 = vld [vmem:[#allocation7 + $0x114] sm:$0xf]
    %v823 = vld [vmem:[#allocation7 + $0x118] sm:$0xff]
    %v824 = vld [vmem:[#allocation7 + $0x120] sm:$0xff]
    %v825 = vld [vmem:[#allocation7 + $0x128] sm:$0xff]
    %v826 = vld [vmem:[#allocation7 + $0x130] sm:$0xf]
    %v827 = vld [vmem:[#allocation7 + $0x134] sm:$0xff]
    %v828 = vld [vmem:[#allocation7 + $0x13c] sm:$0xff]
    %v829 = vld [vmem:[#allocation7 + $0x144] sm:$0xff]
    %v830 = vld [vmem:[#allocation7 + $0x14c] sm:$0xf]
    %v831 = vld [vmem:[#allocation7 + $0x150] sm:$0xff]
    %v832 = vld [vmem:[#allocation7 + $0x158] sm:$0xff]
    %v833 = vld [vmem:[#allocation7 + $0x160] sm:$0xff]
    %v834 = vld [vmem:[#allocation7 + $0x168] sm:$0xf]
    %v835 = vld [vmem:[#allocation7 + $0x16c] sm:$0xff]
    %v836 = vld [vmem:[#allocation7 + $0x174] sm:$0xff]
    %v837 = vld [vmem:[#allocation7 + $0x17c] sm:$0xff]
    %v838 = vld [vmem:[#allocation7 + $0x184] sm:$0xf]
    %v839 = vld [vmem:[#allocation7 + $0x188] sm:$0xff]
    %v840 = vld [vmem:[#allocation7 + $0x190] sm:$0xff]
    %v841 = vld [vmem:[#allocation7 + $0x198] sm:$0xff]
    %v842 = vld [vmem:[#allocation7 + $0x1a0] sm:$0xf]
    %v843 = vld [vmem:[#allocation7 + $0x1a4] sm:$0xff]
    %v844 = vld [vmem:[#allocation7 + $0x1ac] sm:$0xff]
    %v845 = vld [vmem:[#allocation7 + $0x1b4] sm:$0xff]
    %v846 = vld [vmem:[#allocation7 + $0x1bc] sm:$0xf]
    %v847 = vld [vmem:[#allocation7 + $0x1c0] sm:$0xff]
    %v848 = vld [vmem:[#allocation7 + $0x1c8] sm:$0xff]
    %v849 = vld [vmem:[#allocation7 + $0x1d0] sm:$0xff]
    %v850 = vld [vmem:[#allocation7 + $0x1d8] sm:$0xf]
    %v851 = vld [vmem:[#allocation7 + $0x1dc] sm:$0xff]
    %v852 = vld [vmem:[#allocation7 + $0x1e4] sm:$0xff]
    %v853 = vld [vmem:[#allocation7 + $0x1ec] sm:$0xff]
    %v854 = vld [vmem:[#allocation7 + $0x1f4] sm:$0xf]
    %v855 = vld [vmem:[#allocation7 + $0x1f8] sm:$0xff]
    %v856 = vld [vmem:[#allocation7 + $0x200] sm:$0xff]
    %v857 = vld [vmem:[#allocation7 + $0x208] sm:$0xff]
    %v858 = vld [vmem:[#allocation7 + $0x210] sm:$0xf]
    %v859 = vld [vmem:[#allocation7 + $0x214] sm:$0xff]
    %v860 = vld [vmem:[#allocation7 + $0x21c] sm:$0xff]
    %v861 = vld [vmem:[#allocation7 + $0x224] sm:$0xff]
    %v862 = vld [vmem:[#allocation7 + $0x22c] sm:$0xf]
    %v863 = vld [vmem:[#allocation7 + $0x230] sm:$0xff]
    %v864 = vld [vmem:[#allocation7 + $0x238] sm:$0xff]
    %v865 = vld [vmem:[#allocation7 + $0x240] sm:$0xff]
    %v866 = vld [vmem:[#allocation7 + $0x248] sm:$0xf]
    %v867 = vld [vmem:[#allocation7 + $0x24c] sm:$0xff]
    %v868 = vld [vmem:[#allocation7 + $0x254] sm:$0xff]
    %v869 = vld [vmem:[#allocation7 + $0x25c] sm:$0xff]
    %v870 = vld [vmem:[#allocation7 + $0x264] sm:$0xf]
    %v871 = vld [vmem:[#allocation7 + $0x268] sm:$0xff]
    %v872 = vld [vmem:[#allocation7 + $0x270] sm:$0xff]
    %v873 = vld [vmem:[#allocation7 + $0x278] sm:$0xff]
    %v874 = vld [vmem:[#allocation7 + $0x280] sm:$0xf]
    %v875 = vld [vmem:[#allocation7 + $0x284] sm:$0xff]
    %v876 = vld [vmem:[#allocation7 + $0x28c] sm:$0xff]
    %v877 = vld [vmem:[#allocation7 + $0x294] sm:$0xff]
    %v878 = vld [vmem:[#allocation7 + $0x29c] sm:$0xf]
    %v879 = vld [vmem:[#allocation7 + $0x2a0] sm:$0xff]
    %v880 = vld [vmem:[#allocation7 + $0x2a8] sm:$0xff]
    %v881 = vld [vmem:[#allocation7 + $0x2b0] sm:$0xff]
    %v882 = vld [vmem:[#allocation7 + $0x2b8] sm:$0xf]
    %v883 = vld [vmem:[#allocation7 + $0x2bc] sm:$0xff]
    %v884 = vld [vmem:[#allocation7 + $0x2c4] sm:$0xff]
    %v885 = vld [vmem:[#allocation7 + $0x2cc] sm:$0xff]
    %v886 = vld [vmem:[#allocation7 + $0x2d4] sm:$0xf]
    %v887 = vld [vmem:[#allocation7 + $0x2d8] sm:$0xff]
    %v888 = vld [vmem:[#allocation7 + $0x2e0] sm:$0xff]
    %v889 = vld [vmem:[#allocation7 + $0x2e8] sm:$0xff]
    %v890 = vld [vmem:[#allocation7 + $0x2f0] sm:$0xf]
    %v891 = vld [vmem:[#allocation7 + $0x2f4] sm:$0xff]
    %v892 = vld [vmem:[#allocation7 + $0x2fc] sm:$0xff]
    %v893 = vld [vmem:[#allocation7 + $0x304] sm:$0xff]
    %v894 = vld [vmem:[#allocation7 + $0x30c] sm:$0xf]
    %v895 = vld [vmem:[#allocation7 + $0x310] sm:$0xff]
    %v896 = vld [vmem:[#allocation7 + $0x318] sm:$0xff]
    %v897 = vld [vmem:[#allocation7 + $0x320] sm:$0xff]
    %v898 = vld [vmem:[#allocation7 + $0x328] sm:$0xf]
    %v899 = vld [vmem:[#allocation7 + $0x32c] sm:$0xff]
    %v900 = vld [vmem:[#allocation7 + $0x334] sm:$0xff]
    %v901 = vld [vmem:[#allocation7 + $0x33c] sm:$0xff]
    %v902 = vld [vmem:[#allocation7 + $0x344] sm:$0xf]
    %v903 = vld [vmem:[#allocation7 + $0x348] sm:$0xff]
    %v904 = vld [vmem:[#allocation7 + $0x350] sm:$0xff]
    %v905 = vld [vmem:[#allocation7 + $0x358] sm:$0xff]
    %v906 = vld [vmem:[#allocation7 + $0x360] sm:$0xf]
    %v907 = vld [vmem:[#allocation7 + $0x364] sm:$0xff]
    %v908 = vld [vmem:[#allocation7 + $0x36c] sm:$0xff]
    %v909 = vld [vmem:[#allocation7 + $0x374] sm:$0xff]
    %v910 = vld [vmem:[#allocation7 + $0x37c] sm:$0xf]
    %v911 = vld [vmem:[#allocation7 + $0x380] sm:$0xff]
    %v912 = vld [vmem:[#allocation7 + $0x388] sm:$0xff]
    %v913 = vld [vmem:[#allocation7 + $0x390] sm:$0xff]
    %v914 = vld [vmem:[#allocation7 + $0x398] sm:$0xf]
    %v915 = vld [vmem:[#allocation7 + $0x39c] sm:$0xff]
    %v916 = vld [vmem:[#allocation7 + $0x3a4] sm:$0xff]
    %v917 = vld [vmem:[#allocation7 + $0x3ac] sm:$0xff]
    %v918 = vld [vmem:[#allocation7 + $0x3b4] sm:$0xf]
    %v919 = vld [vmem:[#allocation7 + $0x3b8] sm:$0xff]
    %v920 = vld [vmem:[#allocation7 + $0x3c0] sm:$0xff]
    %v921 = vld [vmem:[#allocation7 + $0x3c8] sm:$0xff]
    %v922 = vld [vmem:[#allocation7 + $0x3d0] sm:$0xf]
    %v923 = vld [vmem:[#allocation7 + $0x3d4] sm:$0xff]
    %v924 = vld [vmem:[#allocation7 + $0x3dc] sm:$0xff]
    %v925 = vld [vmem:[#allocation7 + $0x3e4] sm:$0xff]
    %v926 = vld [vmem:[#allocation7 + $0x3ec] sm:$0xf]
    %v927 = vld [vmem:[#allocation7 + $0x3f0] sm:$0xff]
    %v928 = vld [vmem:[#allocation7 + $0x3f8] sm:$0xff]
    %v929 = vld [vmem:[#allocation7 + $0x400] sm:$0xff]
    %v930 = vld [vmem:[#allocation7 + $0x408] sm:$0xf]
    %v931 = vld [vmem:[#allocation7 + $0x40c] sm:$0xff]
    %v932 = vld [vmem:[#allocation7 + $0x414] sm:$0xff]
    %v933 = vld [vmem:[#allocation7 + $0x41c] sm:$0xff]
    %v934 = vld [vmem:[#allocation7 + $0x424] sm:$0xf]
    %v935 = vld [vmem:[#allocation7 + $0x428] sm:$0xff]
    %v936 = vld [vmem:[#allocation7 + $0x430] sm:$0xff]
    %v937 = vld [vmem:[#allocation7 + $0x438] sm:$0xff]
    %v938 = vld [vmem:[#allocation7 + $0x440] sm:$0xf]
    %v939 = vld [vmem:[#allocation7 + $0x444] sm:$0xff]
    %v940 = vld [vmem:[#allocation7 + $0x44c] sm:$0xff]
    %v941 = vld [vmem:[#allocation7 + $0x454] sm:$0xff]
    %v942 = vld [vmem:[#allocation7 + $0x45c] sm:$0xf]
    %v943 = vld [vmem:[#allocation7 + $0x460] sm:$0xff]
    %v944 = vld [vmem:[#allocation7 + $0x468] sm:$0xff]
    %v945 = vld [vmem:[#allocation7 + $0x470] sm:$0xff]
    %v946 = vld [vmem:[#allocation7 + $0x478] sm:$0xf]
    %v947 = vld [vmem:[#allocation7 + $0x47c] sm:$0xff]
    %v948 = vld [vmem:[#allocation7 + $0x484] sm:$0xff]
    %v949 = vld [vmem:[#allocation7 + $0x48c] sm:$0xff]
    %v950 = vld [vmem:[#allocation7 + $0x494] sm:$0xf]
    %v951 = vld [vmem:[#allocation7 + $0x498] sm:$0xff]
    %v952 = vld [vmem:[#allocation7 + $0x4a0] sm:$0xff]
    %v953 = vld [vmem:[#allocation7 + $0x4a8] sm:$0xff]
    %v954 = vld [vmem:[#allocation7 + $0x4b0] sm:$0xf]
    %v955 = vld [vmem:[#allocation7 + $0x4b4] sm:$0xff]
    %v956 = vld [vmem:[#allocation7 + $0x4bc] sm:$0xff]
    %v957 = vld [vmem:[#allocation7 + $0x4c4] sm:$0xff]
    %v958 = vld [vmem:[#allocation7 + $0x4cc] sm:$0xf]
    %v959 = vld [vmem:[#allocation7 + $0x4d0] sm:$0xff]
    %v960 = vld [vmem:[#allocation7 + $0x4d8] sm:$0xff]
    %v961 = vld [vmem:[#allocation7 + $0x4e0] sm:$0xff]
    %v962 = vld [vmem:[#allocation7 + $0x4e8] sm:$0xf]
    %v963 = vld [vmem:[#allocation7 + $0x4ec] sm:$0xff]
    %v964 = vld [vmem:[#allocation7 + $0x4f4] sm:$0xff]
    %v965 = vld [vmem:[#allocation7 + $0x4fc] sm:$0xff]
    %v966 = vld [vmem:[#allocation7 + $0x504] sm:$0xf]
    %v967 = vld [vmem:[#allocation7 + $0x508] sm:$0xff]
    %v968 = vld [vmem:[#allocation7 + $0x510] sm:$0xff]
    %v969 = vld [vmem:[#allocation7 + $0x518] sm:$0xff]
    %v970 = vld [vmem:[#allocation7 + $0x520] sm:$0xf]
    %v971 = vld [vmem:[#allocation7 + $0x524] sm:$0xff]
    %v972 = vld [vmem:[#allocation7 + $0x52c] sm:$0xff]
    %v973 = vld [vmem:[#allocation7 + $0x534] sm:$0xff]
    %v974 = vld [vmem:[#allocation7 + $0x53c] sm:$0xf]
    %v975 = vld [vmem:[#allocation7 + $0x540] sm:$0xff]
    %v976 = vld [vmem:[#allocation7 + $0x548] sm:$0xff]
    %v977 = vld [vmem:[#allocation7 + $0x550] sm:$0xff]
    %v978 = vld [vmem:[#allocation7 + $0x558] sm:$0xf]
    %v979 = vld [vmem:[#allocation7 + $0x55c] sm:$0xff]
    %v980 = vld [vmem:[#allocation7 + $0x564] sm:$0xff]
    %v981 = vld [vmem:[#allocation7 + $0x56c] sm:$0xff]
    %v982 = vld [vmem:[#allocation7 + $0x574] sm:$0xf]
    %v983 = vld [vmem:[#allocation7 + $0x578] sm:$0xff]
    %v984 = vld [vmem:[#allocation7 + $0x580] sm:$0xff]
    %v985 = vld [vmem:[#allocation7 + $0x588] sm:$0xff]
    %v986 = vld [vmem:[#allocation7 + $0x590] sm:$0xf]
    %v987 = vld [vmem:[#allocation7 + $0x594] sm:$0xff]
    %v988 = vld [vmem:[#allocation7 + $0x59c] sm:$0xff]
    %v989 = vld [vmem:[#allocation7 + $0x5a4] sm:$0xff]
    %v990 = vld [vmem:[#allocation7 + $0x5ac] sm:$0xf]
    %v991 = vld [vmem:[#allocation7 + $0x5b0] sm:$0xff]
    %v992 = vld [vmem:[#allocation7 + $0x5b8] sm:$0xff]
    %v993 = vld [vmem:[#allocation7 + $0x5c0] sm:$0xff]
    %v994 = vld [vmem:[#allocation7 + $0x5c8] sm:$0xf]
    %v995 = vld [vmem:[#allocation7 + $0x5cc] sm:$0xff]
    %v996 = vld [vmem:[#allocation7 + $0x5d4] sm:$0xff]
    %v997 = vld [vmem:[#allocation7 + $0x5dc] sm:$0xff]
    %v998 = vld [vmem:[#allocation7 + $0x5e4] sm:$0xf]
    %v999 = vld [vmem:[#allocation7 + $0x5e8] sm:$0xff]
    %v1000 = vld [vmem:[#allocation7 + $0x5f0] sm:$0xff]
    %v1001 = vld [vmem:[#allocation7 + $0x5f8] sm:$0xff]
    %v1002 = vld [vmem:[#allocation7 + $0x600] sm:$0xf]
    %v1003 = vld [vmem:[#allocation7 + $0x604] sm:$0xff]
    %v1004 = vld [vmem:[#allocation7 + $0x60c] sm:$0xff]
    %v1005 = vld [vmem:[#allocation7 + $0x614] sm:$0xff]
    %v1006 = vld [vmem:[#allocation7 + $0x61c] sm:$0xf]
    %v1007 = vld [vmem:[#allocation7 + $0x620] sm:$0xff]
    %v1008 = vld [vmem:[#allocation7 + $0x628] sm:$0xff]
    %v1009 = vld [vmem:[#allocation7 + $0x630] sm:$0xff]
    %v1010 = vld [vmem:[#allocation7 + $0x638] sm:$0xf]
    %v1011 = vld [vmem:[#allocation7 + $0x63c] sm:$0xff]
    %v1012 = vld [vmem:[#allocation7 + $0x644] sm:$0xff]
    %v1013 = vld [vmem:[#allocation7 + $0x64c] sm:$0xff]
    %v1014 = vld [vmem:[#allocation7 + $0x654] sm:$0xf]
    %v1015 = vld [vmem:[#allocation7 + $0x658] sm:$0xff]
    %v1016 = vld [vmem:[#allocation7 + $0x660] sm:$0xff]
    %v1017 = vld [vmem:[#allocation7 + $0x668] sm:$0xff]
    %v1018 = vld [vmem:[#allocation7 + $0x670] sm:$0xf]
    %v1019 = vld [vmem:[#allocation7 + $0x674] sm:$0xff]
    %v1020 = vld [vmem:[#allocation7 + $0x67c] sm:$0xff]
    %v1021 = vld [vmem:[#allocation7 + $0x684] sm:$0xff]
    %v1022 = vld [vmem:[#allocation7 + $0x68c] sm:$0xf]
    %v1023 = vld [vmem:[#allocation7 + $0x690] sm:$0xff]
    %v1024 = vld [vmem:[#allocation7 + $0x698] sm:$0xff]
    %v1025 = vld [vmem:[#allocation7 + $0x6a0] sm:$0xff]
    %v1026 = vld [vmem:[#allocation7 + $0x6a8] sm:$0xf]
    %v1027 = vld [vmem:[#allocation7 + $0x6ac] sm:$0xff]
    %v1028 = vld [vmem:[#allocation7 + $0x6b4] sm:$0xff]
    %v1029 = vld [vmem:[#allocation7 + $0x6bc] sm:$0xff]
    %v1030 = vld [vmem:[#allocation7 + $0x6c4] sm:$0xf]
    %v1031 = vld [vmem:[#allocation7 + $0x6c8] sm:$0xff]
    %v1032 = vld [vmem:[#allocation7 + $0x6d0] sm:$0xff]
    %v1033 = vld [vmem:[#allocation7 + $0x6d8] sm:$0xff]
    %v1034 = vld [vmem:[#allocation7 + $0x6e0] sm:$0xf]
    %v1035 = vld [vmem:[#allocation7 + $0x6e4] sm:$0xff]
    %v1036 = vld [vmem:[#allocation7 + $0x6ec] sm:$0xff]
    %v1037 = vld [vmem:[#allocation7 + $0x6f4] sm:$0xff]
    %v1038 = vld [vmem:[#allocation7 + $0x6fc] sm:$0xf]
    %v1039 = vld [vmem:[%s6] sm:$0xff]
    %v1041 = vlaneseq
    %v1042 = vshrl.u32 %v1041, 7
    %v1043 = vsub.s32 0, %v1042
    %v1044 = vrot.slane %v1039, %v1043
    %v1045 = vlaneseq
    %v1046 = vshrl.u32 %v1045, 7
    %v1047 = vsub.s32 1, %v1046
    %v1048 = vrot.slane %v1039, %v1047
    %v1049 = vlaneseq
    %v1050 = vshrl.u32 %v1049, 7
    %v1051 = vsub.s32 2, %v1050
    %v1052 = vrot.slane %v1039, %v1051
    %v1053 = vlaneseq
    %v1054 = vshrl.u32 %v1053, 7
    %v1055 = vsub.s32 3, %v1054
    %v1056 = vrot.slane %v1039, %v1055
    %v1057 = vlaneseq
    %v1058 = vshrl.u32 %v1057, 7
    %v1059 = vsub.s32 4, %v1058
    %v1060 = vrot.slane %v1039, %v1059
    %v1061 = vlaneseq
    %v1062 = vshrl.u32 %v1061, 7
    %v1063 = vsub.s32 5, %v1062
    %v1064 = vrot.slane %v1039, %v1063
    %v1065 = vlaneseq
    %v1066 = vshrl.u32 %v1065, 7
    %v1067 = vsub.s32 6, %v1066
    %v1068 = vrot.slane %v1039, %v1067
    %v1332 = vunpack.c.l.b16 %v783
    %v1333 = vunpack.c.h.b16 %v783
    %v1334 = vunpack.c.l.b16 %v784
    %v1335 = vunpack.c.h.b16 %v784
    %v1336 = vunpack.c.l.b16 %v785
    %v1337 = vunpack.c.h.b16 %v785
    %v1338 = vunpack.c.l.b16 %v786
    %v1339 = vunpack.c.l.b16 %v787
    %v1340 = vunpack.c.h.b16 %v787
    %v1341 = vunpack.c.l.b16 %v788
    %v1342 = vunpack.c.h.b16 %v788
    %v1343 = vunpack.c.l.b16 %v789
    %v1344 = vunpack.c.h.b16 %v789
    %v1345 = vunpack.c.l.b16 %v790
    %v1346 = vunpack.c.l.b16 %v791
    %v1347 = vunpack.c.h.b16 %v791
    %v1348 = vunpack.c.l.b16 %v792
    %v1349 = vunpack.c.h.b16 %v792
    %v1350 = vunpack.c.l.b16 %v793
    %v1351 = vunpack.c.h.b16 %v793
    %v1352 = vunpack.c.l.b16 %v794
    %v1353 = vunpack.c.l.b16 %v795
    %v1354 = vunpack.c.h.b16 %v795
    %v1355 = vunpack.c.l.b16 %v796
    %v1356 = vunpack.c.h.b16 %v796
    %v1357 = vunpack.c.l.b16 %v797
    %v1358 = vunpack.c.h.b16 %v797
    %v1359 = vunpack.c.l.b16 %v798
    %v1360 = vunpack.c.l.b16 %v799
    %v1361 = vunpack.c.h.b16 %v799
    %v1362 = vunpack.c.l.b16 %v800
    %v1363 = vunpack.c.h.b16 %v800
    %v1364 = vunpack.c.l.b16 %v801
    %v1365 = vunpack.c.h.b16 %v801
    %v1366 = vunpack.c.l.b16 %v802
    %v1367 = vunpack.c.l.b16 %v803
    %v1368 = vunpack.c.h.b16 %v803
    %v1369 = vunpack.c.l.b16 %v804
    %v1370 = vunpack.c.h.b16 %v804
    %v1371 = vunpack.c.l.b16 %v805
    %v1372 = vunpack.c.h.b16 %v805
    %v1373 = vunpack.c.l.b16 %v806
    %v1374 = vunpack.c.l.b16 %v807
    %v1375 = vunpack.c.h.b16 %v807
    %v1376 = vunpack.c.l.b16 %v808
    %v1377 = vunpack.c.h.b16 %v808
    %v1378 = vunpack.c.l.b16 %v809
    %v1379 = vunpack.c.h.b16 %v809
    %v1380 = vunpack.c.l.b16 %v810
    %v1381 = vunpack.c.l.b16 %v811
    %v1382 = vunpack.c.h.b16 %v811
    %v1383 = vunpack.c.l.b16 %v812
    %v1384 = vunpack.c.h.b16 %v812
    %v1385 = vunpack.c.l.b16 %v813
    %v1386 = vunpack.c.h.b16 %v813
    %v1387 = vunpack.c.l.b16 %v814
    %v1388 = vunpack.c.l.b16 %v815
    %v1389 = vunpack.c.h.b16 %v815
    %v1390 = vunpack.c.l.b16 %v816
    %v1391 = vunpack.c.h.b16 %v816
    %v1392 = vunpack.c.l.b16 %v817
    %v1393 = vunpack.c.h.b16 %v817
    %v1394 = vunpack.c.l.b16 %v818
    %v1395 = vunpack.c.l.b16 %v819
    %v1396 = vunpack.c.h.b16 %v819
    %v1397 = vunpack.c.l.b16 %v820
    %v1398 = vunpack.c.h.b16 %v820
    %v1399 = vunpack.c.l.b16 %v821
    %v1400 = vunpack.c.h.b16 %v821
    %v1401 = vunpack.c.l.b16 %v822
    %v1402 = vunpack.c.l.b16 %v823
    %v1403 = vunpack.c.h.b16 %v823
    %v1404 = vunpack.c.l.b16 %v824
    %v1405 = vunpack.c.h.b16 %v824
    %v1406 = vunpack.c.l.b16 %v825
    %v1407 = vunpack.c.h.b16 %v825
    %v1408 = vunpack.c.l.b16 %v826
    %v1409 = vunpack.c.l.b16 %v827
    %v1410 = vunpack.c.h.b16 %v827
    %v1411 = vunpack.c.l.b16 %v828
    %v1412 = vunpack.c.h.b16 %v828
    %v1413 = vunpack.c.l.b16 %v829
    %v1414 = vunpack.c.h.b16 %v829
    %v1415 = vunpack.c.l.b16 %v830
    %v1416 = vunpack.c.l.b16 %v831
    %v1417 = vunpack.c.h.b16 %v831
    %v1418 = vunpack.c.l.b16 %v832
    %v1419 = vunpack.c.h.b16 %v832
    %v1420 = vunpack.c.l.b16 %v833
    %v1421 = vunpack.c.h.b16 %v833
    %v1422 = vunpack.c.l.b16 %v834
    %v1423 = vunpack.c.l.b16 %v835
    %v1424 = vunpack.c.h.b16 %v835
    %v1425 = vunpack.c.l.b16 %v836
    %v1426 = vunpack.c.h.b16 %v836
    %v1427 = vunpack.c.l.b16 %v837
    %v1428 = vunpack.c.h.b16 %v837
    %v1429 = vunpack.c.l.b16 %v838
    %v1430 = vunpack.c.l.b16 %v839
    %v1431 = vunpack.c.h.b16 %v839
    %v1432 = vunpack.c.l.b16 %v840
    %v1433 = vunpack.c.h.b16 %v840
    %v1434 = vunpack.c.l.b16 %v841
    %v1435 = vunpack.c.h.b16 %v841
    %v1436 = vunpack.c.l.b16 %v842
    %v1437 = vunpack.c.l.b16 %v843
    %v1438 = vunpack.c.h.b16 %v843
    %v1439 = vunpack.c.l.b16 %v844
    %v1440 = vunpack.c.h.b16 %v844
    %v1441 = vunpack.c.l.b16 %v845
    %v1442 = vunpack.c.h.b16 %v845
    %v1443 = vunpack.c.l.b16 %v846
    %v1444 = vunpack.c.l.b16 %v847
    %v1445 = vunpack.c.h.b16 %v847
    %v1446 = vunpack.c.l.b16 %v848
    %v1447 = vunpack.c.h.b16 %v848
    %v1448 = vunpack.c.l.b16 %v849
    %v1449 = vunpack.c.h.b16 %v849
    %v1450 = vunpack.c.l.b16 %v850
    %v1451 = vunpack.c.l.b16 %v851
    %v1452 = vunpack.c.h.b16 %v851
    %v1453 = vunpack.c.l.b16 %v852
    %v1454 = vunpack.c.h.b16 %v852
    %v1455 = vunpack.c.l.b16 %v853
    %v1456 = vunpack.c.h.b16 %v853
    %v1457 = vunpack.c.l.b16 %v854
    %v1458 = vunpack.c.l.b16 %v855
    %v1459 = vunpack.c.h.b16 %v855
    %v1460 = vunpack.c.l.b16 %v856
    %v1461 = vunpack.c.h.b16 %v856
    %v1462 = vunpack.c.l.b16 %v857
    %v1463 = vunpack.c.h.b16 %v857
    %v1464 = vunpack.c.l.b16 %v858
    %v1465 = vunpack.c.l.b16 %v859
    %v1466 = vunpack.c.h.b16 %v859
    %v1467 = vunpack.c.l.b16 %v860
    %v1468 = vunpack.c.h.b16 %v860
    %v1469 = vunpack.c.l.b16 %v861
    %v1470 = vunpack.c.h.b16 %v861
    %v1471 = vunpack.c.l.b16 %v862
    %v1472 = vunpack.c.l.b16 %v863
    %v1473 = vunpack.c.h.b16 %v863
    %v1474 = vunpack.c.l.b16 %v864
    %v1475 = vunpack.c.h.b16 %v864
    %v1476 = vunpack.c.l.b16 %v865
    %v1477 = vunpack.c.h.b16 %v865
    %v1478 = vunpack.c.l.b16 %v866
    %v1479 = vunpack.c.l.b16 %v867
    %v1480 = vunpack.c.h.b16 %v867
    %v1481 = vunpack.c.l.b16 %v868
    %v1482 = vunpack.c.h.b16 %v868
    %v1483 = vunpack.c.l.b16 %v869
    %v1484 = vunpack.c.h.b16 %v869
    %v1485 = vunpack.c.l.b16 %v870
    %v1486 = vunpack.c.l.b16 %v871
    %v1487 = vunpack.c.h.b16 %v871
    %v1488 = vunpack.c.l.b16 %v872
    %v1489 = vunpack.c.h.b16 %v872
    %v1490 = vunpack.c.l.b16 %v873
    %v1491 = vunpack.c.h.b16 %v873
    %v1492 = vunpack.c.l.b16 %v874
    %v1493 = vunpack.c.l.b16 %v875
    %v1494 = vunpack.c.h.b16 %v875
    %v1495 = vunpack.c.l.b16 %v876
    %v1496 = vunpack.c.h.b16 %v876
    %v1497 = vunpack.c.l.b16 %v877
    %v1498 = vunpack.c.h.b16 %v877
    %v1499 = vunpack.c.l.b16 %v878
    %v1500 = vunpack.c.l.b16 %v879
    %v1501 = vunpack.c.h.b16 %v879
    %v1502 = vunpack.c.l.b16 %v880
    %v1503 = vunpack.c.h.b16 %v880
    %v1504 = vunpack.c.l.b16 %v881
    %v1505 = vunpack.c.h.b16 %v881
    %v1506 = vunpack.c.l.b16 %v882
    %v1507 = vunpack.c.l.b16 %v883
    %v1508 = vunpack.c.h.b16 %v883
    %v1509 = vunpack.c.l.b16 %v884
    %v1510 = vunpack.c.h.b16 %v884
    %v1511 = vunpack.c.l.b16 %v885
    %v1512 = vunpack.c.h.b16 %v885
    %v1513 = vunpack.c.l.b16 %v886
    %v1514 = vunpack.c.l.b16 %v887
    %v1515 = vunpack.c.h.b16 %v887
    %v1516 = vunpack.c.l.b16 %v888
    %v1517 = vunpack.c.h.b16 %v888
    %v1518 = vunpack.c.l.b16 %v889
    %v1519 = vunpack.c.h.b16 %v889
    %v1520 = vunpack.c.l.b16 %v890
    %v1521 = vunpack.c.l.b16 %v891
    %v1522 = vunpack.c.h.b16 %v891
    %v1523 = vunpack.c.l.b16 %v892
    %v1524 = vunpack.c.h.b16 %v892
    %v1525 = vunpack.c.l.b16 %v893
    %v1526 = vunpack.c.h.b16 %v893
    %v1527 = vunpack.c.l.b16 %v894
    %v1528 = vunpack.c.l.b16 %v895
    %v1529 = vunpack.c.h.b16 %v895
    %v1530 = vunpack.c.l.b16 %v896
    %v1531 = vunpack.c.h.b16 %v896
    %v1532 = vunpack.c.l.b16 %v897
    %v1533 = vunpack.c.h.b16 %v897
    %v1534 = vunpack.c.l.b16 %v898
    %v1535 = vunpack.c.l.b16 %v899
    %v1536 = vunpack.c.h.b16 %v899
    %v1537 = vunpack.c.l.b16 %v900
    %v1538 = vunpack.c.h.b16 %v900
    %v1539 = vunpack.c.l.b16 %v901
    %v1540 = vunpack.c.h.b16 %v901
    %v1541 = vunpack.c.l.b16 %v902
    %v1542 = vunpack.c.l.b16 %v903
    %v1543 = vunpack.c.h.b16 %v903
    %v1544 = vunpack.c.l.b16 %v904
    %v1545 = vunpack.c.h.b16 %v904
    %v1546 = vunpack.c.l.b16 %v905
    %v1547 = vunpack.c.h.b16 %v905
    %v1548 = vunpack.c.l.b16 %v906
    %v1549 = vunpack.c.l.b16 %v907
    %v1550 = vunpack.c.h.b16 %v907
    %v1551 = vunpack.c.l.b16 %v908
    %v1552 = vunpack.c.h.b16 %v908
    %v1553 = vunpack.c.l.b16 %v909
    %v1554 = vunpack.c.h.b16 %v909
    %v1555 = vunpack.c.l.b16 %v910
    %v1556 = vunpack.c.l.b16 %v911
    %v1557 = vunpack.c.h.b16 %v911
    %v1558 = vunpack.c.l.b16 %v912
    %v1559 = vunpack.c.h.b16 %v912
    %v1560 = vunpack.c.l.b16 %v913
    %v1561 = vunpack.c.h.b16 %v913
    %v1562 = vunpack.c.l.b16 %v914
    %v1563 = vunpack.c.l.b16 %v915
    %v1564 = vunpack.c.h.b16 %v915
    %v1565 = vunpack.c.l.b16 %v916
    %v1566 = vunpack.c.h.b16 %v916
    %v1567 = vunpack.c.l.b16 %v917
    %v1568 = vunpack.c.h.b16 %v917
    %v1569 = vunpack.c.l.b16 %v918
    %v1570 = vunpack.c.l.b16 %v919
    %v1571 = vunpack.c.h.b16 %v919
    %v1572 = vunpack.c.l.b16 %v920
    %v1573 = vunpack.c.h.b16 %v920
    %v1574 = vunpack.c.l.b16 %v921
    %v1575 = vunpack.c.h.b16 %v921
    %v1576 = vunpack.c.l.b16 %v922
    %v1577 = vunpack.c.l.b16 %v923
    %v1578 = vunpack.c.h.b16 %v923
    %v1579 = vunpack.c.l.b16 %v924
    %v1580 = vunpack.c.h.b16 %v924
    %v1581 = vunpack.c.l.b16 %v925
    %v1582 = vunpack.c.h.b16 %v925
    %v1583 = vunpack.c.l.b16 %v926
    %v1584 = vunpack.c.l.b16 %v927
    %v1585 = vunpack.c.h.b16 %v927
    %v1586 = vunpack.c.l.b16 %v928
    %v1587 = vunpack.c.h.b16 %v928
    %v1588 = vunpack.c.l.b16 %v929
    %v1589 = vunpack.c.h.b16 %v929
    %v1590 = vunpack.c.l.b16 %v930
    %v1591 = vunpack.c.l.b16 %v931
    %v1592 = vunpack.c.h.b16 %v931
    %v1593 = vunpack.c.l.b16 %v932
    %v1594 = vunpack.c.h.b16 %v932
    %v1595 = vunpack.c.l.b16 %v933
    %v1596 = vunpack.c.h.b16 %v933
    %v1597 = vunpack.c.l.b16 %v934
    %v1598 = vunpack.c.l.b16 %v935
    %v1599 = vunpack.c.h.b16 %v935
    %v1600 = vunpack.c.l.b16 %v936
    %v1601 = vunpack.c.h.b16 %v936
    %v1602 = vunpack.c.l.b16 %v937
    %v1603 = vunpack.c.h.b16 %v937
    %v1604 = vunpack.c.l.b16 %v938
    %v1605 = vunpack.c.l.b16 %v939
    %v1606 = vunpack.c.h.b16 %v939
    %v1607 = vunpack.c.l.b16 %v940
    %v1608 = vunpack.c.h.b16 %v940
    %v1609 = vunpack.c.l.b16 %v941
    %v1610 = vunpack.c.h.b16 %v941
    %v1611 = vunpack.c.l.b16 %v942
    %v1612 = vunpack.c.l.b16 %v943
    %v1613 = vunpack.c.h.b16 %v943
    %v1614 = vunpack.c.l.b16 %v944
    %v1615 = vunpack.c.h.b16 %v944
    %v1616 = vunpack.c.l.b16 %v945
    %v1617 = vunpack.c.h.b16 %v945
    %v1618 = vunpack.c.l.b16 %v946
    %v1619 = vunpack.c.l.b16 %v947
    %v1620 = vunpack.c.h.b16 %v947
    %v1621 = vunpack.c.l.b16 %v948
    %v1622 = vunpack.c.h.b16 %v948
    %v1623 = vunpack.c.l.b16 %v949
    %v1624 = vunpack.c.h.b16 %v949
    %v1625 = vunpack.c.l.b16 %v950
    %v1626 = vunpack.c.l.b16 %v951
    %v1627 = vunpack.c.h.b16 %v951
    %v1628 = vunpack.c.l.b16 %v952
    %v1629 = vunpack.c.h.b16 %v952
    %v1630 = vunpack.c.l.b16 %v953
    %v1631 = vunpack.c.h.b16 %v953
    %v1632 = vunpack.c.l.b16 %v954
    %v1633 = vunpack.c.l.b16 %v955
    %v1634 = vunpack.c.h.b16 %v955
    %v1635 = vunpack.c.l.b16 %v956
    %v1636 = vunpack.c.h.b16 %v956
    %v1637 = vunpack.c.l.b16 %v957
    %v1638 = vunpack.c.h.b16 %v957
    %v1639 = vunpack.c.l.b16 %v958
    %v1640 = vunpack.c.l.b16 %v959
    %v1641 = vunpack.c.h.b16 %v959
    %v1642 = vunpack.c.l.b16 %v960
    %v1643 = vunpack.c.h.b16 %v960
    %v1644 = vunpack.c.l.b16 %v961
    %v1645 = vunpack.c.h.b16 %v961
    %v1646 = vunpack.c.l.b16 %v962
    %v1647 = vunpack.c.l.b16 %v963
    %v1648 = vunpack.c.h.b16 %v963
    %v1649 = vunpack.c.l.b16 %v964
    %v1650 = vunpack.c.h.b16 %v964
    %v1651 = vunpack.c.l.b16 %v965
    %v1652 = vunpack.c.h.b16 %v965
    %v1653 = vunpack.c.l.b16 %v966
    %v1654 = vunpack.c.l.b16 %v967
    %v1655 = vunpack.c.h.b16 %v967
    %v1656 = vunpack.c.l.b16 %v968
    %v1657 = vunpack.c.h.b16 %v968
    %v1658 = vunpack.c.l.b16 %v969
    %v1659 = vunpack.c.h.b16 %v969
    %v1660 = vunpack.c.l.b16 %v970
    %v1661 = vunpack.c.l.b16 %v971
    %v1662 = vunpack.c.h.b16 %v971
    %v1663 = vunpack.c.l.b16 %v972
    %v1664 = vunpack.c.h.b16 %v972
    %v1665 = vunpack.c.l.b16 %v973
    %v1666 = vunpack.c.h.b16 %v973
    %v1667 = vunpack.c.l.b16 %v974
    %v1668 = vunpack.c.l.b16 %v975
    %v1669 = vunpack.c.h.b16 %v975
    %v1670 = vunpack.c.l.b16 %v976
    %v1671 = vunpack.c.h.b16 %v976
    %v1672 = vunpack.c.l.b16 %v977
    %v1673 = vunpack.c.h.b16 %v977
    %v1674 = vunpack.c.l.b16 %v978
    %v1675 = vunpack.c.l.b16 %v979
    %v1676 = vunpack.c.h.b16 %v979
    %v1677 = vunpack.c.l.b16 %v980
    %v1678 = vunpack.c.h.b16 %v980
    %v1679 = vunpack.c.l.b16 %v981
    %v1680 = vunpack.c.h.b16 %v981
    %v1681 = vunpack.c.l.b16 %v982
    %v1682 = vunpack.c.l.b16 %v983
    %v1683 = vunpack.c.h.b16 %v983
    %v1684 = vunpack.c.l.b16 %v984
    %v1685 = vunpack.c.h.b16 %v984
    %v1686 = vunpack.c.l.b16 %v985
    %v1687 = vunpack.c.h.b16 %v985
    %v1688 = vunpack.c.l.b16 %v986
    %v1689 = vunpack.c.l.b16 %v987
    %v1690 = vunpack.c.h.b16 %v987
    %v1691 = vunpack.c.l.b16 %v988
    %v1692 = vunpack.c.h.b16 %v988
    %v1693 = vunpack.c.l.b16 %v989
    %v1694 = vunpack.c.h.b16 %v989
    %v1695 = vunpack.c.l.b16 %v990
    %v1696 = vunpack.c.l.b16 %v991
    %v1697 = vunpack.c.h.b16 %v991
    %v1698 = vunpack.c.l.b16 %v992
    %v1699 = vunpack.c.h.b16 %v992
    %v1700 = vunpack.c.l.b16 %v993
    %v1701 = vunpack.c.h.b16 %v993
    %v1702 = vunpack.c.l.b16 %v994
    %v1703 = vunpack.c.l.b16 %v995
    %v1704 = vunpack.c.h.b16 %v995
    %v1705 = vunpack.c.l.b16 %v996
    %v1706 = vunpack.c.h.b16 %v996
    %v1707 = vunpack.c.l.b16 %v997
    %v1708 = vunpack.c.h.b16 %v997
    %v1709 = vunpack.c.l.b16 %v998
    %v1710 = vunpack.c.l.b16 %v999
    %v1711 = vunpack.c.h.b16 %v999
    %v1712 = vunpack.c.l.b16 %v1000
    %v1713 = vunpack.c.h.b16 %v1000
    %v1714 = vunpack.c.l.b16 %v1001
    %v1715 = vunpack.c.h.b16 %v1001
    %v1716 = vunpack.c.l.b16 %v1002
    %v1717 = vunpack.c.l.b16 %v1003
    %v1718 = vunpack.c.h.b16 %v1003
    %v1719 = vunpack.c.l.b16 %v1004
    %v1720 = vunpack.c.h.b16 %v1004
    %v1721 = vunpack.c.l.b16 %v1005
    %v1722 = vunpack.c.h.b16 %v1005
    %v1723 = vunpack.c.l.b16 %v1006
    %v1724 = vunpack.c.l.b16 %v1007
    %v1725 = vunpack.c.h.b16 %v1007
    %v1726 = vunpack.c.l.b16 %v1008
    %v1727 = vunpack.c.h.b16 %v1008
    %v1728 = vunpack.c.l.b16 %v1009
    %v1729 = vunpack.c.h.b16 %v1009
    %v1730 = vunpack.c.l.b16 %v1010
    %v1731 = vunpack.c.l.b16 %v1011
    %v1732 = vunpack.c.h.b16 %v1011
    %v1733 = vunpack.c.l.b16 %v1012
    %v1734 = vunpack.c.h.b16 %v1012
    %v1735 = vunpack.c.l.b16 %v1013
    %v1736 = vunpack.c.h.b16 %v1013
    %v1737 = vunpack.c.l.b16 %v1014
    %v1738 = vunpack.c.l.b16 %v1015
    %v1739 = vunpack.c.h.b16 %v1015
    %v1740 = vunpack.c.l.b16 %v1016
    %v1741 = vunpack.c.h.b16 %v1016
    %v1742 = vunpack.c.l.b16 %v1017
    %v1743 = vunpack.c.h.b16 %v1017
    %v1744 = vunpack.c.l.b16 %v1018
    %v1745 = vunpack.c.l.b16 %v1019
    %v1746 = vunpack.c.h.b16 %v1019
    %v1747 = vunpack.c.l.b16 %v1020
    %v1748 = vunpack.c.h.b16 %v1020
    %v1749 = vunpack.c.l.b16 %v1021
    %v1750 = vunpack.c.h.b16 %v1021
    %v1751 = vunpack.c.l.b16 %v1022
    %v1752 = vunpack.c.l.b16 %v1023
    %v1753 = vunpack.c.h.b16 %v1023
    %v1754 = vunpack.c.l.b16 %v1024
    %v1755 = vunpack.c.h.b16 %v1024
    %v1756 = vunpack.c.l.b16 %v1025
    %v1757 = vunpack.c.h.b16 %v1025
    %v1758 = vunpack.c.l.b16 %v1026
    %v1759 = vunpack.c.l.b16 %v1027
    %v1760 = vunpack.c.h.b16 %v1027
    %v1761 = vunpack.c.l.b16 %v1028
    %v1762 = vunpack.c.h.b16 %v1028
    %v1763 = vunpack.c.l.b16 %v1029
    %v1764 = vunpack.c.h.b16 %v1029
    %v1765 = vunpack.c.l.b16 %v1030
    %v1766 = vunpack.c.l.b16 %v1031
    %v1767 = vunpack.c.h.b16 %v1031
    %v1768 = vunpack.c.l.b16 %v1032
    %v1769 = vunpack.c.h.b16 %v1032
    %v1770 = vunpack.c.l.b16 %v1033
    %v1771 = vunpack.c.h.b16 %v1033
    %v1772 = vunpack.c.l.b16 %v1034
    %v1773 = vunpack.c.l.b16 %v1035
    %v1774 = vunpack.c.h.b16 %v1035
    %v1775 = vunpack.c.l.b16 %v1036
    %v1776 = vunpack.c.h.b16 %v1036
    %v1777 = vunpack.c.l.b16 %v1037
    %v1778 = vunpack.c.h.b16 %v1037
    %v1779 = vunpack.c.l.b16 %v1038
    %v1780 = vpack.c.b16 %v1339, %v1332
    %v1781 = vpack.c.b16 %v1340, %v1333
    %v1782 = vpack.c.b16 %v1341, %v1334
    %v1783 = vpack.c.b16 %v1342, %v1335
    %v1784 = vpack.c.b16 %v1343, %v1336
    %v1785 = vpack.c.b16 %v1344, %v1337
    %v1786 = vpack.c.b16 %v1345, %v1338
    %v1787 = vpack.c.b16 %v1353, %v1346
    %v1788 = vpack.c.b16 %v1354, %v1347
    %v1789 = vpack.c.b16 %v1355, %v1348
    %v1790 = vpack.c.b16 %v1356, %v1349
    %v1791 = vpack.c.b16 %v1357, %v1350
    %v1792 = vpack.c.b16 %v1358, %v1351
    %v1793 = vpack.c.b16 %v1359, %v1352
    %v1794 = vpack.c.b16 %v1367, %v1360
    %v1795 = vpack.c.b16 %v1368, %v1361
    %v1796 = vpack.c.b16 %v1369, %v1362
    %v1797 = vpack.c.b16 %v1370, %v1363
    %v1798 = vpack.c.b16 %v1371, %v1364
    %v1799 = vpack.c.b16 %v1372, %v1365
    %v1800 = vpack.c.b16 %v1373, %v1366
    %v1801 = vpack.c.b16 %v1381, %v1374
    %v1802 = vpack.c.b16 %v1382, %v1375
    %v1803 = vpack.c.b16 %v1383, %v1376
    %v1804 = vpack.c.b16 %v1384, %v1377
    %v1805 = vpack.c.b16 %v1385, %v1378
    %v1806 = vpack.c.b16 %v1386, %v1379
    %v1807 = vpack.c.b16 %v1387, %v1380
    %v1808 = vpack.c.b16 %v1395, %v1388
    %v1809 = vpack.c.b16 %v1396, %v1389
    %v1810 = vpack.c.b16 %v1397, %v1390
    %v1811 = vpack.c.b16 %v1398, %v1391
    %v1812 = vpack.c.b16 %v1399, %v1392
    %v1813 = vpack.c.b16 %v1400, %v1393
    %v1814 = vpack.c.b16 %v1401, %v1394
    %v1815 = vpack.c.b16 %v1409, %v1402
    %v1816 = vpack.c.b16 %v1410, %v1403
    %v1817 = vpack.c.b16 %v1411, %v1404
    %v1818 = vpack.c.b16 %v1412, %v1405
    %v1819 = vpack.c.b16 %v1413, %v1406
    %v1820 = vpack.c.b16 %v1414, %v1407
    %v1821 = vpack.c.b16 %v1415, %v1408
    %v1822 = vpack.c.b16 %v1423, %v1416
    %v1823 = vpack.c.b16 %v1424, %v1417
    %v1824 = vpack.c.b16 %v1425, %v1418
    %v1825 = vpack.c.b16 %v1426, %v1419
    %v1826 = vpack.c.b16 %v1427, %v1420
    %v1827 = vpack.c.b16 %v1428, %v1421
    %v1828 = vpack.c.b16 %v1429, %v1422
    %v1829 = vpack.c.b16 %v1437, %v1430
    %v1830 = vpack.c.b16 %v1438, %v1431
    %v1831 = vpack.c.b16 %v1439, %v1432
    %v1832 = vpack.c.b16 %v1440, %v1433
    %v1833 = vpack.c.b16 %v1441, %v1434
    %v1834 = vpack.c.b16 %v1442, %v1435
    %v1835 = vpack.c.b16 %v1443, %v1436
    %v1836 = vpack.c.b16 %v1451, %v1444
    %v1837 = vpack.c.b16 %v1452, %v1445
    %v1838 = vpack.c.b16 %v1453, %v1446
    %v1839 = vpack.c.b16 %v1454, %v1447
    %v1840 = vpack.c.b16 %v1455, %v1448
    %v1841 = vpack.c.b16 %v1456, %v1449
    %v1842 = vpack.c.b16 %v1457, %v1450
    %v1843 = vpack.c.b16 %v1465, %v1458
    %v1844 = vpack.c.b16 %v1466, %v1459
    %v1845 = vpack.c.b16 %v1467, %v1460
    %v1846 = vpack.c.b16 %v1468, %v1461
    %v1847 = vpack.c.b16 %v1469, %v1462
    %v1848 = vpack.c.b16 %v1470, %v1463
    %v1849 = vpack.c.b16 %v1471, %v1464
    %v1850 = vpack.c.b16 %v1479, %v1472
    %v1851 = vpack.c.b16 %v1480, %v1473
    %v1852 = vpack.c.b16 %v1481, %v1474
    %v1853 = vpack.c.b16 %v1482, %v1475
    %v1854 = vpack.c.b16 %v1483, %v1476
    %v1855 = vpack.c.b16 %v1484, %v1477
    %v1856 = vpack.c.b16 %v1485, %v1478
    %v1857 = vpack.c.b16 %v1493, %v1486
    %v1858 = vpack.c.b16 %v1494, %v1487
    %v1859 = vpack.c.b16 %v1495, %v1488
    %v1860 = vpack.c.b16 %v1496, %v1489
    %v1861 = vpack.c.b16 %v1497, %v1490
    %v1862 = vpack.c.b16 %v1498, %v1491
    %v1863 = vpack.c.b16 %v1499, %v1492
    %v1864 = vpack.c.b16 %v1507, %v1500
    %v1865 = vpack.c.b16 %v1508, %v1501
    %v1866 = vpack.c.b16 %v1509, %v1502
    %v1867 = vpack.c.b16 %v1510, %v1503
    %v1868 = vpack.c.b16 %v1511, %v1504
    %v1869 = vpack.c.b16 %v1512, %v1505
    %v1870 = vpack.c.b16 %v1513, %v1506
    %v1871 = vpack.c.b16 %v1521, %v1514
    %v1872 = vpack.c.b16 %v1522, %v1515
    %v1873 = vpack.c.b16 %v1523, %v1516
    %v1874 = vpack.c.b16 %v1524, %v1517
    %v1875 = vpack.c.b16 %v1525, %v1518
    %v1876 = vpack.c.b16 %v1526, %v1519
    %v1877 = vpack.c.b16 %v1527, %v1520
    %v1878 = vpack.c.b16 %v1535, %v1528
    %v1879 = vpack.c.b16 %v1536, %v1529
    %v1880 = vpack.c.b16 %v1537, %v1530
    %v1881 = vpack.c.b16 %v1538, %v1531
    %v1882 = vpack.c.b16 %v1539, %v1532
    %v1883 = vpack.c.b16 %v1540, %v1533
    %v1884 = vpack.c.b16 %v1541, %v1534
    %v1885 = vpack.c.b16 %v1549, %v1542
    %v1886 = vpack.c.b16 %v1550, %v1543
    %v1887 = vpack.c.b16 %v1551, %v1544
    %v1888 = vpack.c.b16 %v1552, %v1545
    %v1889 = vpack.c.b16 %v1553, %v1546
    %v1890 = vpack.c.b16 %v1554, %v1547
    %v1891 = vpack.c.b16 %v1555, %v1548
    %v1892 = vpack.c.b16 %v1563, %v1556
    %v1893 = vpack.c.b16 %v1564, %v1557
    %v1894 = vpack.c.b16 %v1565, %v1558
    %v1895 = vpack.c.b16 %v1566, %v1559
    %v1896 = vpack.c.b16 %v1567, %v1560
    %v1897 = vpack.c.b16 %v1568, %v1561
    %v1898 = vpack.c.b16 %v1569, %v1562
    %v1899 = vpack.c.b16 %v1577, %v1570
    %v1900 = vpack.c.b16 %v1578, %v1571
    %v1901 = vpack.c.b16 %v1579, %v1572
    %v1902 = vpack.c.b16 %v1580, %v1573
    %v1903 = vpack.c.b16 %v1581, %v1574
    %v1904 = vpack.c.b16 %v1582, %v1575
    %v1905 = vpack.c.b16 %v1583, %v1576
    %v1906 = vpack.c.b16 %v1591, %v1584
    %v1907 = vpack.c.b16 %v1592, %v1585
    %v1908 = vpack.c.b16 %v1593, %v1586
    %v1909 = vpack.c.b16 %v1594, %v1587
    %v1910 = vpack.c.b16 %v1595, %v1588
    %v1911 = vpack.c.b16 %v1596, %v1589
    %v1912 = vpack.c.b16 %v1597, %v1590
    %v1913 = vpack.c.b16 %v1605, %v1598
    %v1914 = vpack.c.b16 %v1606, %v1599
    %v1915 = vpack.c.b16 %v1607, %v1600
    %v1916 = vpack.c.b16 %v1608, %v1601
    %v1917 = vpack.c.b16 %v1609, %v1602
    %v1918 = vpack.c.b16 %v1610, %v1603
    %v1919 = vpack.c.b16 %v1611, %v1604
    %v1920 = vpack.c.b16 %v1619, %v1612
    %v1921 = vpack.c.b16 %v1620, %v1613
    %v1922 = vpack.c.b16 %v1621, %v1614
    %v1923 = vpack.c.b16 %v1622, %v1615
    %v1924 = vpack.c.b16 %v1623, %v1616
    %v1925 = vpack.c.b16 %v1624, %v1617
    %v1926 = vpack.c.b16 %v1625, %v1618
    %v1927 = vpack.c.b16 %v1633, %v1626
    %v1928 = vpack.c.b16 %v1634, %v1627
    %v1929 = vpack.c.b16 %v1635, %v1628
    %v1930 = vpack.c.b16 %v1636, %v1629
    %v1931 = vpack.c.b16 %v1637, %v1630
    %v1932 = vpack.c.b16 %v1638, %v1631
    %v1933 = vpack.c.b16 %v1639, %v1632
    %v1934 = vpack.c.b16 %v1647, %v1640
    %v1935 = vpack.c.b16 %v1648, %v1641
    %v1936 = vpack.c.b16 %v1649, %v1642
    %v1937 = vpack.c.b16 %v1650, %v1643
    %v1938 = vpack.c.b16 %v1651, %v1644
    %v1939 = vpack.c.b16 %v1652, %v1645
    %v1940 = vpack.c.b16 %v1653, %v1646
    %v1941 = vpack.c.b16 %v1661, %v1654
    %v1942 = vpack.c.b16 %v1662, %v1655
    %v1943 = vpack.c.b16 %v1663, %v1656
    %v1944 = vpack.c.b16 %v1664, %v1657
    %v1945 = vpack.c.b16 %v1665, %v1658
    %v1946 = vpack.c.b16 %v1666, %v1659
    %v1947 = vpack.c.b16 %v1667, %v1660
    %v1948 = vpack.c.b16 %v1675, %v1668
    %v1949 = vpack.c.b16 %v1676, %v1669
    %v1950 = vpack.c.b16 %v1677, %v1670
    %v1951 = vpack.c.b16 %v1678, %v1671
    %v1952 = vpack.c.b16 %v1679, %v1672
    %v1953 = vpack.c.b16 %v1680, %v1673
    %v1954 = vpack.c.b16 %v1681, %v1674
    %v1955 = vpack.c.b16 %v1689, %v1682
    %v1956 = vpack.c.b16 %v1690, %v1683
    %v1957 = vpack.c.b16 %v1691, %v1684
    %v1958 = vpack.c.b16 %v1692, %v1685
    %v1959 = vpack.c.b16 %v1693, %v1686
    %v1960 = vpack.c.b16 %v1694, %v1687
    %v1961 = vpack.c.b16 %v1695, %v1688
    %v1962 = vpack.c.b16 %v1703, %v1696
    %v1963 = vpack.c.b16 %v1704, %v1697
    %v1964 = vpack.c.b16 %v1705, %v1698
    %v1965 = vpack.c.b16 %v1706, %v1699
    %v1966 = vpack.c.b16 %v1707, %v1700
    %v1967 = vpack.c.b16 %v1708, %v1701
    %v1968 = vpack.c.b16 %v1709, %v1702
    %v1969 = vpack.c.b16 %v1717, %v1710
    %v1970 = vpack.c.b16 %v1718, %v1711
    %v1971 = vpack.c.b16 %v1719, %v1712
    %v1972 = vpack.c.b16 %v1720, %v1713
    %v1973 = vpack.c.b16 %v1721, %v1714
    %v1974 = vpack.c.b16 %v1722, %v1715
    %v1975 = vpack.c.b16 %v1723, %v1716
    %v1976 = vpack.c.b16 %v1731, %v1724
    %v1977 = vpack.c.b16 %v1732, %v1725
    %v1978 = vpack.c.b16 %v1733, %v1726
    %v1979 = vpack.c.b16 %v1734, %v1727
    %v1980 = vpack.c.b16 %v1735, %v1728
    %v1981 = vpack.c.b16 %v1736, %v1729
    %v1982 = vpack.c.b16 %v1737, %v1730
    %v1983 = vpack.c.b16 %v1745, %v1738
    %v1984 = vpack.c.b16 %v1746, %v1739
    %v1985 = vpack.c.b16 %v1747, %v1740
    %v1986 = vpack.c.b16 %v1748, %v1741
    %v1987 = vpack.c.b16 %v1749, %v1742
    %v1988 = vpack.c.b16 %v1750, %v1743
    %v1989 = vpack.c.b16 %v1751, %v1744
    %v1990 = vpack.c.b16 %v1759, %v1752
    %v1991 = vpack.c.b16 %v1760, %v1753
    %v1992 = vpack.c.b16 %v1761, %v1754
    %v1993 = vpack.c.b16 %v1762, %v1755
    %v1994 = vpack.c.b16 %v1763, %v1756
    %v1995 = vpack.c.b16 %v1764, %v1757
    %v1996 = vpack.c.b16 %v1765, %v1758
    %v1997 = vpack.c.b16 %v1773, %v1766
    %v1998 = vpack.c.b16 %v1774, %v1767
    %v1999 = vpack.c.b16 %v1775, %v1768
    %v2000 = vpack.c.b16 %v1776, %v1769
    %v2001 = vpack.c.b16 %v1777, %v1770
    %v2002 = vpack.c.b16 %v1778, %v1771
    %v2003 = vpack.c.b16 %v1779, %v1772
    %2228 = vmatprep.subr.bf16.mxu0 %v1781
    %2229 = vmatpush1.bf16.msra.mxu0 %v1780
    %2230 = vmatprep.subr.bf16.mxu0 %v1788
    %2231 = vmatpush1.bf16.msra.mxu0 %v1787
    %2232 = vmatprep.subr.bf16.mxu0 %v1795
    %2233 = vmatpush1.bf16.msra.mxu0 %v1794
    %2234 = vmatprep.subr.bf16.mxu0 %v1802
    %2235 = vmatpush1.bf16.msra.mxu0 %v1801
    %2236 = vmatprep.subr.bf16.mxu0 %v1809
    %2237 = vmatpush1.bf16.msra.mxu0 %v1808
    %2238 = vmatprep.subr.bf16.mxu0 %v1816
    %2239 = vmatpush1.bf16.msra.mxu0 %v1815
    %2240 = vmatprep.subr.bf16.mxu0 %v1823
    %2241 = vmatpush1.bf16.msra.mxu0 %v1822
    %2242 = vmatprep.subr.bf16.mxu0 %v1830
    %2243 = vmatpush1.bf16.msra.mxu0 %v1829
    %2244 = vmatprep.subr.bf16.mxu0 %v1837
    %2245 = vmatpush1.bf16.msra.mxu0 %v1836
    %2246 = vmatprep.subr.bf16.mxu0 %v1844
    %2247 = vmatpush1.bf16.msra.mxu0 %v1843
    %2248 = vmatprep.subr.bf16.mxu0 %v1851
    %2249 = vmatpush1.bf16.msra.mxu0 %v1850
    %2250 = vmatprep.subr.bf16.mxu0 %v1858
    %2251 = vmatpush1.bf16.msra.mxu0 %v1857
    %2252 = vmatprep.subr.bf16.mxu0 %v1865
    %2253 = vmatpush1.bf16.msra.mxu0 %v1864
    %2254 = vmatprep.subr.bf16.mxu0 %v1872
    %2255 = vmatpush1.bf16.msra.mxu0 %v1871
    %2256 = vmatprep.subr.bf16.mxu0 %v1879
    %2257 = vmatpush1.bf16.msra.mxu0 %v1878
    %2258 = vmatprep.subr.bf16.mxu0 %v1886
    %2259 = vmatpush1.bf16.msra.mxu0 %v1885
    %2260 = vmatprep.mubr.bf16.mxu0 %v780
    %2261 = vmatmul.mubr.bf16.gmra.mrb[0].mxu0 %v779
    %v2262 = vpop.f32.mrb[0].mxu0
    %v2263 = vadd.f32 %v1044, %v2262
    %v2264 = vpop.f32.mrb[0].mxu0
    %v2265 = vadd.f32 %v1048, %v2264
    %v2266 = vpop.f32.mrb[0].mxu0
    %v2267 = vpop.f32.mrb[0].mxu0
    %2268 = vdwg.mxu0
    %2269 = vmatprep.subr.bf16.mxu0 %v1893
    %2270 = vmatpush1.bf16.msra.mxu0 %v1892
    %2271 = vmatprep.subr.bf16.mxu0 %v1900
    %2272 = vmatpush1.bf16.msra.mxu0 %v1899
    %2273 = vmatprep.subr.bf16.mxu0 %v1907
    %2274 = vmatpush1.bf16.msra.mxu0 %v1906
    %2275 = vmatprep.subr.bf16.mxu0 %v1914
    %2276 = vmatpush1.bf16.msra.mxu0 %v1913
    %2277 = vmatprep.subr.bf16.mxu0 %v1921
    %2278 = vmatpush1.bf16.msra.mxu0 %v1920
    %2279 = vmatprep.subr.bf16.mxu0 %v1928
    %2280 = vmatpush1.bf16.msra.mxu0 %v1927
    %2281 = vmatprep.subr.bf16.mxu0 %v1935
    %2282 = vmatpush1.bf16.msra.mxu0 %v1934
    %2283 = vmatprep.subr.bf16.mxu0 %v1942
    %2284 = vmatpush1.bf16.msra.mxu0 %v1941
    %2285 = vmatprep.subr.bf16.mxu0 %v1949
    %2286 = vmatpush1.bf16.msra.mxu0 %v1948
    %2287 = vmatprep.subr.bf16.mxu0 %v1956
    %2288 = vmatpush1.bf16.msra.mxu0 %v1955
    %2289 = vmatprep.subr.bf16.mxu0 %v1963
    %2290 = vmatpush1.bf16.msra.mxu0 %v1962
    %2291 = vmatprep.subr.bf16.mxu0 %v1970
    %2292 = vmatpush1.bf16.msra.mxu0 %v1969
    %2293 = vmatprep.subr.bf16.mxu0 %v1977
    %2294 = vmatpush1.bf16.msra.mxu0 %v1976
    %2295 = vmatprep.subr.bf16.mxu0 %v1984
    %2296 = vmatpush1.bf16.msra.mxu0 %v1983
    %2297 = vmatprep.subr.bf16.mxu0 %v1991
    %2298 = vmatpush1.bf16.msra.mxu0 %v1990
    %2299 = vmatprep.subr.bf16.mxu0 %v1998
    %2300 = vmatpush1.bf16.msra.mxu0 %v1997
    %2301 = vmatprep.mubr.bf16.mxu0 %v782
    %2302 = vmatmul.mubr.bf16.gmra.mrb[0].mxu0 %v781
    %v2303 = vpop.f32.mrb[0].mxu0
    %v2304 = vadd.f32 %v2263, %v2303
    %v2305 = vpop.f32.mrb[0].mxu0
    %v2306 = vadd.f32 %v2265, %v2305
    %v2307 = vpop.f32.mrb[0].mxu0
    %v2308 = vpop.f32.mrb[0].mxu0
    %2309 = vdwg.mxu0
    %2310 = vmatprep.subr.bf16.mxu0 %v1783
    %2311 = vmatpush1.bf16.msra.mxu0 %v1782
    %2312 = vmatprep.subr.bf16.mxu0 %v1790
    %2313 = vmatpush1.bf16.msra.mxu0 %v1789
    %2314 = vmatprep.subr.bf16.mxu0 %v1797
    %2315 = vmatpush1.bf16.msra.mxu0 %v1796
    %2316 = vmatprep.subr.bf16.mxu0 %v1804
    %2317 = vmatpush1.bf16.msra.mxu0 %v1803
    %2318 = vmatprep.subr.bf16.mxu0 %v1811
    %2319 = vmatpush1.bf16.msra.mxu0 %v1810
    %2320 = vmatprep.subr.bf16.mxu0 %v1818
    %2321 = vmatpush1.bf16.msra.mxu0 %v1817
    %2322 = vmatprep.subr.bf16.mxu0 %v1825
    %2323 = vmatpush1.bf16.msra.mxu0 %v1824
    %2324 = vmatprep.subr.bf16.mxu0 %v1832
    %2325 = vmatpush1.bf16.msra.mxu0 %v1831
    %2326 = vmatprep.subr.bf16.mxu0 %v1839
    %2327 = vmatpush1.bf16.msra.mxu0 %v1838
    %2328 = vmatprep.subr.bf16.mxu0 %v1846
    %2329 = vmatpush1.bf16.msra.mxu0 %v1845
    %2330 = vmatprep.subr.bf16.mxu0 %v1853
    %2331 = vmatpush1.bf16.msra.mxu0 %v1852
    %2332 = vmatprep.subr.bf16.mxu0 %v1860
    %2333 = vmatpush1.bf16.msra.mxu0 %v1859
    %2334 = vmatprep.subr.bf16.mxu0 %v1867
    %2335 = vmatpush1.bf16.msra.mxu0 %v1866
    %2336 = vmatprep.subr.bf16.mxu0 %v1874
    %2337 = vmatpush1.bf16.msra.mxu0 %v1873
    %2338 = vmatprep.subr.bf16.mxu0 %v1881
    %2339 = vmatpush1.bf16.msra.mxu0 %v1880
    %2340 = vmatprep.subr.bf16.mxu0 %v1888
    %2341 = vmatpush1.bf16.msra.mxu0 %v1887
    %2342 = vmatprep.mubr.bf16.mxu0 %v780
    %2343 = vmatmul.mubr.bf16.gmra.mrb[0].mxu0 %v779
    %v2344 = vpop.f32.mrb[0].mxu0
    %v2345 = vadd.f32 %v1052, %v2344
    %v2346 = vpop.f32.mrb[0].mxu0
    %v2347 = vadd.f32 %v1056, %v2346
    %v2348 = vpop.f32.mrb[0].mxu0
    %v2349 = vpop.f32.mrb[0].mxu0
    %2350 = vdwg.mxu0
    %2351 = vmatprep.subr.bf16.mxu0 %v1895
    %2352 = vmatpush1.bf16.msra.mxu0 %v1894
    %2353 = vmatprep.subr.bf16.mxu0 %v1902
    %2354 = vmatpush1.bf16.msra.mxu0 %v1901
    %2355 = vmatprep.subr.bf16.mxu0 %v1909
    %2356 = vmatpush1.bf16.msra.mxu0 %v1908
    %2357 = vmatprep.subr.bf16.mxu0 %v1916
    %2358 = vmatpush1.bf16.msra.mxu0 %v1915
    %2359 = vmatprep.subr.bf16.mxu0 %v1923
    %2360 = vmatpush1.bf16.msra.mxu0 %v1922
    %2361 = vmatprep.subr.bf16.mxu0 %v1930
    %2362 = vmatpush1.bf16.msra.mxu0 %v1929
    %2363 = vmatprep.subr.bf16.mxu0 %v1937
    %2364 = vmatpush1.bf16.msra.mxu0 %v1936
    %2365 = vmatprep.subr.bf16.mxu0 %v1944
    %2366 = vmatpush1.bf16.msra.mxu0 %v1943
    %2367 = vmatprep.subr.bf16.mxu0 %v1951
    %2368 = vmatpush1.bf16.msra.mxu0 %v1950
    %2369 = vmatprep.subr.bf16.mxu0 %v1958
    %2370 = vmatpush1.bf16.msra.mxu0 %v1957
    %2371 = vmatprep.subr.bf16.mxu0 %v1965
    %2372 = vmatpush1.bf16.msra.mxu0 %v1964
    %2373 = vmatprep.subr.bf16.mxu0 %v1972
    %2374 = vmatpush1.bf16.msra.mxu0 %v1971
    %2375 = vmatprep.subr.bf16.mxu0 %v1979
    %2376 = vmatpush1.bf16.msra.mxu0 %v1978
    %2377 = vmatprep.subr.bf16.mxu0 %v1986
    %2378 = vmatpush1.bf16.msra.mxu0 %v1985
    %2379 = vmatprep.subr.bf16.mxu0 %v1993
    %2380 = vmatpush1.bf16.msra.mxu0 %v1992
    %2381 = vmatprep.subr.bf16.mxu0 %v2000
    %2382 = vmatpush1.bf16.msra.mxu0 %v1999
    %2383 = vmatprep.mubr.bf16.mxu0 %v782
    %2384 = vmatmul.mubr.bf16.gmra.mrb[0].mxu0 %v781
    %v2385 = vpop.f32.mrb[0].mxu0
    %v2386 = vadd.f32 %v2345, %v2385
    %v2387 = vpop.f32.mrb[0].mxu0
    %v2388 = vadd.f32 %v2347, %v2387
    %v2389 = vpop.f32.mrb[0].mxu0
    %v2390 = vpop.f32.mrb[0].mxu0
    %2391 = vdwg.mxu0
    %2392 = vmatprep.subr.bf16.mxu0 %v1785
    %2393 = vmatpush1.bf16.msra.mxu0 %v1784
    %2394 = vmatprep.subr.bf16.mxu0 %v1792
    %2395 = vmatpush1.bf16.msra.mxu0 %v1791
    %2396 = vmatprep.subr.bf16.mxu0 %v1799
    %2397 = vmatpush1.bf16.msra.mxu0 %v1798
    %2398 = vmatprep.subr.bf16.mxu0 %v1806
    %2399 = vmatpush1.bf16.msra.mxu0 %v1805
    %2400 = vmatprep.subr.bf16.mxu0 %v1813
    %2401 = vmatpush1.bf16.msra.mxu0 %v1812
    %2402 = vmatprep.subr.bf16.mxu0 %v1820
    %2403 = vmatpush1.bf16.msra.mxu0 %v1819
    %2404 = vmatprep.subr.bf16.mxu0 %v1827
    %2405 = vmatpush1.bf16.msra.mxu0 %v1826
    %2406 = vmatprep.subr.bf16.mxu0 %v1834
    %2407 = vmatpush1.bf16.msra.mxu0 %v1833
    %2408 = vmatprep.subr.bf16.mxu0 %v1841
    %2409 = vmatpush1.bf16.msra.mxu0 %v1840
    %2410 = vmatprep.subr.bf16.mxu0 %v1848
    %2411 = vmatpush1.bf16.msra.mxu0 %v1847
    %2412 = vmatprep.subr.bf16.mxu0 %v1855
    %2413 = vmatpush1.bf16.msra.mxu0 %v1854
    %2414 = vmatprep.subr.bf16.mxu0 %v1862
    %2415 = vmatpush1.bf16.msra.mxu0 %v1861
    %2416 = vmatprep.subr.bf16.mxu0 %v1869
    %2417 = vmatpush1.bf16.msra.mxu0 %v1868
    %2418 = vmatprep.subr.bf16.mxu0 %v1876
    %2419 = vmatpush1.bf16.msra.mxu0 %v1875
    %2420 = vmatprep.subr.bf16.mxu0 %v1883
    %2421 = vmatpush1.bf16.msra.mxu0 %v1882
    %2422 = vmatprep.subr.bf16.mxu0 %v1890
    %2423 = vmatpush1.bf16.msra.mxu0 %v1889
    %2424 = vmatprep.mubr.bf16.mxu0 %v780
    %2425 = vmatmul.mubr.bf16.gmra.mrb[0].mxu0 %v779
    %v2426 = vpop.f32.mrb[0].mxu0
    %v2427 = vadd.f32 %v1060, %v2426
    %v2428 = vpop.f32.mrb[0].mxu0
    %v2429 = vadd.f32 %v1064, %v2428
    %v2430 = vpop.f32.mrb[0].mxu0
    %v2431 = vpop.f32.mrb[0].mxu0
    %2432 = vdwg.mxu0
    %2433 = vmatprep.subr.bf16.mxu0 %v1897
    %2434 = vmatpush1.bf16.msra.mxu0 %v1896
    %2435 = vmatprep.subr.bf16.mxu0 %v1904
    %2436 = vmatpush1.bf16.msra.mxu0 %v1903
    %2437 = vmatprep.subr.bf16.mxu0 %v1911
    %2438 = vmatpush1.bf16.msra.mxu0 %v1910
    %2439 = vmatprep.subr.bf16.mxu0 %v1918
    %2440 = vmatpush1.bf16.msra.mxu0 %v1917
    %2441 = vmatprep.subr.bf16.mxu0 %v1925
    %2442 = vmatpush1.bf16.msra.mxu0 %v1924
    %2443 = vmatprep.subr.bf16.mxu0 %v1932
    %2444 = vmatpush1.bf16.msra.mxu0 %v1931
    %2445 = vmatprep.subr.bf16.mxu0 %v1939
    %2446 = vmatpush1.bf16.msra.mxu0 %v1938
    %2447 = vmatprep.subr.bf16.mxu0 %v1946
    %2448 = vmatpush1.bf16.msra.mxu0 %v1945
    %2449 = vmatprep.subr.bf16.mxu0 %v1953
    %2450 = vmatpush1.bf16.msra.mxu0 %v1952
    %2451 = vmatprep.subr.bf16.mxu0 %v1960
    %2452 = vmatpush1.bf16.msra.mxu0 %v1959
    %2453 = vmatprep.subr.bf16.mxu0 %v1967
    %2454 = vmatpush1.bf16.msra.mxu0 %v1966
    %2455 = vmatprep.subr.bf16.mxu0 %v1974
    %2456 = vmatpush1.bf16.msra.mxu0 %v1973
    %2457 = vmatprep.subr.bf16.mxu0 %v1981
    %2458 = vmatpush1.bf16.msra.mxu0 %v1980
    %2459 = vmatprep.subr.bf16.mxu0 %v1988
    %2460 = vmatpush1.bf16.msra.mxu0 %v1987
    %2461 = vmatprep.subr.bf16.mxu0 %v1995
    %2462 = vmatpush1.bf16.msra.mxu0 %v1994
    %2463 = vmatprep.subr.bf16.mxu0 %v2002
    %2464 = vmatpush1.bf16.msra.mxu0 %v2001
    %2465 = vmatprep.mubr.bf16.mxu0 %v782
    %2466 = vmatmul.mubr.bf16.gmra.mrb[0].mxu0 %v781
    %v2467 = vpop.f32.mrb[0].mxu0
    %v2468 = vadd.f32 %v2427, %v2467
    %v2469 = vpop.f32.mrb[0].mxu0
    %v2470 = vadd.f32 %v2429, %v2469
    %v2471 = vpop.f32.mrb[0].mxu0
    %v2472 = vpop.f32.mrb[0].mxu0
    %2473 = vdwg.mxu0
    %2474 = vmatprep.subr.bf16.mxu0 0
    %2475 = vmatpush1.bf16.msra.mxu0 %v1786
    %2476 = vmatprep.subr.bf16.mxu0 0
    %2477 = vmatpush1.bf16.msra.mxu0 %v1793
    %2478 = vmatprep.subr.bf16.mxu0 0
    %2479 = vmatpush1.bf16.msra.mxu0 %v1800
    %2480 = vmatprep.subr.bf16.mxu0 0
    %2481 = vmatpush1.bf16.msra.mxu0 %v1807
    %2482 = vmatprep.subr.bf16.mxu0 0
    %2483 = vmatpush1.bf16.msra.mxu0 %v1814
    %2484 = vmatprep.subr.bf16.mxu0 0
    %2485 = vmatpush1.bf16.msra.mxu0 %v1821
    %2486 = vmatprep.subr.bf16.mxu0 0
    %2487 = vmatpush1.bf16.msra.mxu0 %v1828
    %2488 = vmatprep.subr.bf16.mxu0 0
    %2489 = vmatpush1.bf16.msra.mxu0 %v1835
    %2490 = vmatprep.subr.bf16.mxu0 0
    %2491 = vmatpush1.bf16.msra.mxu0 %v1842
    %2492 = vmatprep.subr.bf16.mxu0 0
    %2493 = vmatpush1.bf16.msra.mxu0 %v1849
    %2494 = vmatprep.subr.bf16.mxu0 0
    %2495 = vmatpush1.bf16.msra.mxu0 %v1856
    %2496 = vmatprep.subr.bf16.mxu0 0
    %2497 = vmatpush1.bf16.msra.mxu0 %v1863
    %2498 = vmatprep.subr.bf16.mxu0 0
    %2499 = vmatpush1.bf16.msra.mxu0 %v1870
    %2500 = vmatprep.subr.bf16.mxu0 0
    %2501 = vmatpush1.bf16.msra.mxu0 %v1877
    %2502 = vmatprep.subr.bf16.mxu0 0
    %2503 = vmatpush1.bf16.msra.mxu0 %v1884
    %2504 = vmatprep.subr.bf16.mxu0 0
    %2505 = vmatpush1.bf16.msra.mxu0 %v1891
    %2506 = vmatprep.mubr.bf16.mxu0 %v780
    %2507 = vmatmul.mubr.bf16.gmra.mrb[0].mxu0 %v779
    %v2508 = vpop.f32.mrb[0].mxu0
    %v2509 = vadd.f32 %v1068, %v2508
    %v2510 = vpop.f32.mrb[0].mxu0
    %v2511 = vpop.f32.mrb[0].mxu0
    %v2512 = vpop.f32.mrb[0].mxu0
    %2513 = vdwg.mxu0
    %2514 = vmatprep.subr.bf16.mxu0 0
    %2515 = vmatpush1.bf16.msra.mxu0 %v1898
    %2516 = vmatprep.subr.bf16.mxu0 0
    %2517 = vmatpush1.bf16.msra.mxu0 %v1905
    %2518 = vmatprep.subr.bf16.mxu0 0
    %2519 = vmatpush1.bf16.msra.mxu0 %v1912
    %2520 = vmatprep.subr.bf16.mxu0 0
    %2521 = vmatpush1.bf16.msra.mxu0 %v1919
    %2522 = vmatprep.subr.bf16.mxu0 0
    %2523 = vmatpush1.bf16.msra.mxu0 %v1926
    %2524 = vmatprep.subr.bf16.mxu0 0
    %2525 = vmatpush1.bf16.msra.mxu0 %v1933
    %2526 = vmatprep.subr.bf16.mxu0 0
    %2527 = vmatpush1.bf16.msra.mxu0 %v1940
    %2528 = vmatprep.subr.bf16.mxu0 0
    %2529 = vmatpush1.bf16.msra.mxu0 %v1947
    %2530 = vmatprep.subr.bf16.mxu0 0
    %2531 = vmatpush1.bf16.msra.mxu0 %v1954
    %2532 = vmatprep.subr.bf16.mxu0 0
    %2533 = vmatpush1.bf16.msra.mxu0 %v1961
    %2534 = vmatprep.subr.bf16.mxu0 0
    %2535 = vmatpush1.bf16.msra.mxu0 %v1968
    %2536 = vmatprep.subr.bf16.mxu0 0
    %2537 = vmatpush1.bf16.msra.mxu0 %v1975
    %2538 = vmatprep.subr.bf16.mxu0 0
    %2539 = vmatpush1.bf16.msra.mxu0 %v1982
    %2540 = vmatprep.subr.bf16.mxu0 0
    %2541 = vmatpush1.bf16.msra.mxu0 %v1989
    %2542 = vmatprep.subr.bf16.mxu0 0
    %2543 = vmatpush1.bf16.msra.mxu0 %v1996
    %2544 = vmatprep.subr.bf16.mxu0 0
    %2545 = vmatpush1.bf16.msra.mxu0 %v2003
    %2546 = vmatprep.mubr.bf16.mxu0 %v782
    %2547 = vmatmul.mubr.bf16.gmra.mrb[0].mxu0 %v781
    %v2548 = vpop.f32.mrb[0].mxu0
    %v2549 = vadd.f32 %v2509, %v2548
    %v2550 = vpop.f32.mrb[0].mxu0
    %v2551 = vpop.f32.mrb[0].mxu0
    %v2552 = vpop.f32.mrb[0].mxu0
    %2553 = vdwg.mxu0
    %v2554 = vxor.u32 %v2304, 2147483648
    %v2555 = vxor.u32 %v2306, 2147483648
    %v2556 = vxor.u32 %v2386, 2147483648
    %v2557 = vxor.u32 %v2388, 2147483648
    %v2558 = vxor.u32 %v2468, 2147483648
    %v2559 = vxor.u32 %v2470, 2147483648
    %v2560 = vxor.u32 %v2549, 2147483648
    %v2561 = vmul.f32 %v2554, 1.442695
    %v2562 = vpow.pop %v2561
    %v2563 = vmul.f32 %v2555, 1.442695
    %v2564 = vpow.pop %v2563
    %v2565 = vmul.f32 %v2556, 1.442695
    %v2566 = vpow.pop %v2565
    %v2567 = vmul.f32 %v2557, 1.442695
    %v2568 = vpow.pop %v2567
    %v2569 = vmul.f32 %v2558, 1.442695
    %v2570 = vpow.pop %v2569
    %v2571 = vmul.f32 %v2559, 1.442695
    %v2572 = vpow.pop %v2571
    %v2573 = vmul.f32 %v2560, 1.442695
    %v2574 = vpow.pop %v2573
    %v2575 = vadd.f32 %v2562, 1.0
    %v2576 = vadd.f32 %v2564, 1.0
    %v2577 = vadd.f32 %v2566, 1.0
    %v2578 = vadd.f32 %v2568, 1.0
    %v2579 = vadd.f32 %v2570, 1.0
    %v2580 = vadd.f32 %v2572, 1.0
    %v2581 = vadd.f32 %v2574, 1.0
    %v2582 = vrcp.pop %v2575
    %v2583 = vmul.f32 1.0, %v2582
    %v2584 = vrcp.pop %v2576
    %v2585 = vmul.f32 1.0, %v2584
    %v2586 = vrcp.pop %v2577
    %v2587 = vmul.f32 1.0, %v2586
    %v2588 = vrcp.pop %v2578
    %v2589 = vmul.f32 1.0, %v2588
    %v2590 = vrcp.pop %v2579
    %v2591 = vmul.f32 1.0, %v2590
    %v2592 = vrcp.pop %v2580
    %v2593 = vmul.f32 1.0, %v2592
    %v2594 = vrcp.pop %v2581
    %v2595 = vmul.f32 1.0, %v2594
    %v2596 = vpack.c.bf16 %v2583, %v2583
    %v2597 = vpack.c.bf16 %v2585, %v2585
    %v2598 = vpack.c.bf16 %v2587, %v2587
    %v2599 = vpack.c.bf16 %v2589, %v2589
    %v2600 = vpack.c.bf16 %v2591, %v2591
    %v2601 = vpack.c.bf16 %v2593, %v2593
    %v2602 = vpack.c.bf16 %v2595, %v2595
    %v2610 = vunpack.c.l.b16 %v2596
    %v2611 = vunpack.c.l.b16 %v2597
    %v2612 = vunpack.c.l.b16 %v2598
    %v2613 = vunpack.c.l.b16 %v2599
    %v2614 = vunpack.c.l.b16 %v2600
    %v2615 = vunpack.c.l.b16 %v2601
    %v2616 = vunpack.c.l.b16 %v2602
    %v2617 = vpack.c.b16 %v2611, %v2610
    %v2618 = vpack.c.b16 %v2613, %v2612
    %v2619 = vpack.c.b16 %v2615, %v2614
    %v2620 = vpack.c.b16 %v2616, %v2616
    %2625 = vst [vmem:[#allocation8] sm:$0xff] %v2617
    %2626 = vst [vmem:[#allocation8 + $0x8] sm:$0xff] %v2618
    %2627 = vst [vmem:[#allocation8 + $0x10] sm:$0xff] %v2619
    %2628 = vst [vmem:[#allocation8 + $0x18] sm:$0xf] %v2620
    // Predicated region
    $region42: #{gen_forward.1} parent=1 // pred_check
      _
    $region43: #{gen_forward.1} parent=1 // pred_check_branch
      %2630 = sbr.rel (0) target = $region45
    $region44: #{gen_forward.1} parent=1 // pred_region
      %s2632 = ssub.s32 448, 448
      %2633 = vsyncadd [#allocation4], %s2632
      %s2635 = sshll.u32 [#allocation8], 4
      %s2636 = int_to_ptr.vmem [resolvable:$true] %s2635
      %2638 = dma.vmem_to_hbm [thread:$0]  %s2636, 448, %s7, [#allocation4]
    $region45: #{gen_forward.1} parent=1 // pred_fallthru
      _
    // Predicated region
    $region46: #{gen_forward.1} parent=1 // pred_check
      _
    $region47: #{gen_forward.1} parent=1 // pred_check_branch
      %2640 = sbr.rel (0) target = $region49
    $region48: #{gen_forward.1} parent=1 // pred_region
      %2641 = dma.done [#allocation4], 448
    $region49: #{gen_forward.1} parent=1 // pred_fallthru
      _
    %2642 = vsyncpa [#allocation3], 1
    %2643 = vsyncpa [#allocation6], 1
    %2644 = vsyncpa [#allocation4], 1

</llo_original>
